<compile_context>
chip_gen: v7x
topology: tpu7x:2x2x1
jax: 0.10.0
libtpu: 0.0.40
codegen_flags: <defaults>
</compile_context>

<pallas_src>
import jax
import jax.numpy as jnp
from jax.experimental import pallas as pl
from jax.experimental.pallas import tpu as pltpu

# ---- problem sizes (small, consistent with the module) ----
B, L, D = 2, 16, 32          # batch, seq_len, d_model
H = 4                        # attention heads
DH = D // H                  # head dim
DFF = 4 * D                  # d_ff = 4 * d_model = 128
MA = 5                       # moving_avg kernel size (odd, like 25 in paper)
SCALE = 1.0 / (DH ** 0.5)
BL = B * L                   # stacked batch*seq rows = 32
HW = H * BL                  # lane width of the attention slab = 128


def encoder_layer_kernel(x_ref, xt_ref, wq_ref, wkT_ref, wvo_ref, w1_ref, w2_ref,
                         dec_ref, ksel_ref, bias_ref, seg_ref, out_ref, attn_ref):
    x = x_ref[...]                                                     # [BL, D]

    # ---- value->output path: xvo[h*BL + j, :] = x[j, :] @ (wv_h @ wo_h) ----
    # Four small MXU matmuls that depend only on x (issued early, off the
    # softmax critical path); sublane concat at 32-row boundaries is free.
    xvo = jnp.concatenate(
        [jnp.dot(x, wvo_ref[h * D:(h + 1) * D, :],
                 preferred_element_type=jnp.float32) for h in range(H)],
        axis=0)                                                        # [HW, D]

    # ---- all-head scores in ONE lane-dense [BL, HW] slab ----
    # q has the 1/sqrt(dh) scale folded into the weight host-side.
    q = jnp.dot(x, wq_ref[...], preferred_element_type=jnp.float32)    # [BL, D]
    # k^T lane-tiled over heads, built by one matmul against lane-tiled x^T,
    # then masked to the block-diagonal head structure (4 dense VALU muls).
    kt = jnp.dot(wkT_ref[...], xt_ref[...],
                 preferred_element_type=jnp.float32)                   # [D, HW]
    kblk = kt * ksel_ref[...]                                          # block-diag K^T
    s = jnp.dot(q, kblk, preferred_element_type=jnp.float32) + bias_ref[...]

    # Safe softmax: global row max is an upper bound of every per-head max,
    # so the shift is valid; cross-batch lanes carry -1e30 and exp to 0.
    s = s - jnp.max(s, axis=-1, keepdims=True)
    e = jnp.exp(s)                                                     # 4 dense EUP vregs
    # Per-head (32-lane segment) denominators, broadcast to every lane of the
    # segment, via one MXU matmul (MXU has plenty of slack).
    denom = jnp.dot(e, seg_ref[...], preferred_element_type=jnp.float32)
    inv = pl.reciprocal(denom, approx=True)
    inv = inv * (2.0 - denom * inv)                                    # one Newton step
    a = e * inv                                                        # [BL, HW]
    attn_ref[...] = a                                                  # single dense store

    # ---- AV + output projection folded into ONE matmul ----
    new_x = jnp.dot(a, xvo, preferred_element_type=jnp.float32)        # [BL, D]

    # x = x + dropout(new_x)   (dropout = identity, eval mode)
    x1 = x + new_x

    # ---- series_decomp as matmul: res = (I - M) @ x (block-diag per batch) ----
    dec = dec_ref[...]                                                 # [BL, BL]
    res1 = jnp.dot(dec, x1, preferred_element_type=jnp.float32)

    # ---- FFN (kernel-size-1 conv1d == per-timestep matmul), relu ----
    y = jnp.maximum(jnp.dot(res1, w1_ref[...], preferred_element_type=jnp.float32), 0.0)
    y = jnp.dot(y, w2_ref[...], preferred_element_type=jnp.float32)

    # ---- decomp2(x + y) ----
    out_ref[...] = jnp.dot(dec, res1 + y,
                           preferred_element_type=jnp.float32).astype(out_ref.dtype)


def _decomp_matrix(seq, kern):
    """(I - M) where M is the replicate-padded moving-average operator."""
    pad = (kern - 1) // 2
    m = jnp.zeros((seq, seq), dtype=jnp.float32)
    idx = jnp.arange(seq)
    for t in range(-pad, pad + 1):
        c = jnp.clip(idx + t, 0, seq - 1)
        m = m.at[idx, c].add(1.0 / kern)
    return jnp.eye(seq, dtype=jnp.float32) - m


def make_encoder_layer(wq, wk, wv, wo, w1, w2):
    """Precompute all constant operands once; return a jitted forward(x)."""
    # scale folded into Wq; K provided transposed for the lane-tiled k^T matmul
    wq_s = (wq * SCALE).astype(jnp.float32)                            # [D, D]
    wkT = wk.T.astype(jnp.float32)                                     # [D, D]
    # per-head value->output weights, stacked along sublanes: rows [h*D,(h+1)*D)
    wvo = jnp.concatenate(
        [wv[:, h * DH:(h + 1) * DH] @ wo[h * DH:(h + 1) * DH, :] for h in range(H)],
        axis=0).astype(jnp.float32)                                    # [H*D, D]

    # block-diagonal (I - M): one matmul per decomp in-kernel
    dec_blk = jnp.kron(jnp.eye(B, dtype=jnp.float32), _decomp_matrix(L, MA))  # [BL, BL]

    # head selector for the block-diag K^T (row channel's head == lane block's head)
    row_head = jnp.arange(D) // DH                                     # [D]
    lane_head = jnp.arange(HW) // BL                                   # [HW]
    ksel = (row_head[:, None] == lane_head[None, :]).astype(jnp.float32)   # [D, HW]

    # cross-batch attention mask, pre-tiled over the 4 head segments
    row_batch = jnp.arange(BL) // L                                    # [BL]
    lane_batch = (jnp.arange(HW) % BL) // L                            # [HW]
    bias = jnp.where(row_batch[:, None] == lane_batch[None, :],
                     0.0, -1e30).astype(jnp.float32)                   # [BL, HW]

    # per-head-segment summation matrix (broadcasts the denominator in-lane)
    seg = (lane_head[:, None] == lane_head[None, :]).astype(jnp.float32)   # [HW, HW]

    vmem = pl.BlockSpec(memory_space=pltpu.MemorySpace.VMEM)
    kernel = pl.pallas_call(
        encoder_layer_kernel,
        out_shape=(
            jax.ShapeDtypeStruct((BL, D), jnp.float32),                # res (stacked)
            jax.ShapeDtypeStruct((BL, HW), jnp.float32),               # attn, lane-dense staging
        ),
        in_specs=[vmem] * 11,
        out_specs=(vmem, vmem),
    )

    @jax.jit
    def forward(x):
        x_slab = x.reshape(BL, D)                                      # stack batch on sublanes
        xt_tiled = jnp.tile(x_slab.T, (1, H))                          # [D, HW] layout plumbing
        out_slab, attn_stage = kernel(x_slab, xt_tiled, wq_s, wkT, wvo,
                                      w1, w2, dec_blk, ksel, bias, seg)
        res = out_slab.reshape(B, L, D)
        # un-stage attention: attn_stage[b*L+q, h*BL + b*L + k] -> attn[b, h, q, k]
        st = attn_stage.reshape(B, L, H, B, L)
        attn = jnp.stack([st[b, :, :, b, :] for b in range(B)], axis=0)  # [B, L, H, L]
        return res, attn.transpose(0, 2, 1, 3)                         # [B, H, L, L]

    return forward


# ---- pure-JAX reference for correctness ----
def _moving_mean(v, kern):
    pad = (kern - 1) // 2
    seq = v.shape[0]
    front = jnp.broadcast_to(v[0:1, :], (pad, v.shape[1]))
    end = jnp.broadcast_to(v[seq - 1:seq, :], (pad, v.shape[1]))
    p = jnp.concatenate([front, v, end], axis=0)
    acc = p[0:seq, :]
    for i in range(1, kern):
        acc = acc + p[i:i + seq, :]
    return acc / float(kern)


def ref_forward(x, wq, wk, wv, wo, w1, w2):
    q = (x @ wq).reshape(B, L, H, DH).transpose(0, 2, 1, 3)
    k = (x @ wk).reshape(B, L, H, DH).transpose(0, 2, 1, 3)
    v = (x @ wv).reshape(B, L, H, DH).transpose(0, 2, 1, 3)
    s = jnp.einsum('bhqd,bhkd->bhqk', q, k) * SCALE
    a = jax.nn.softmax(s, axis=-1)
    o = jnp.einsum('bhqk,bhkd->bhqd', a, v).transpose(0, 2, 1, 3).reshape(B, L, D)
    x1 = x + o @ wo
    mm = jax.vmap(lambda t: _moving_mean(t, MA))
    res1 = x1 - mm(x1)
    y = jnp.maximum(res1 @ w1, 0.0) @ w2
    z = res1 + y
    return z - mm(z), a


if __name__ == "__main__":
    key = jax.random.PRNGKey(0)
    ks = jax.random.split(key, 7)
    x = jax.random.normal(ks[0], (B, L, D), dtype=jnp.float32)
    wq = jax.random.normal(ks[1], (D, D), dtype=jnp.float32) / (D ** 0.5)
    wk = jax.random.normal(ks[2], (D, D), dtype=jnp.float32) / (D ** 0.5)
    wv = jax.random.normal(ks[3], (D, D), dtype=jnp.float32) / (D ** 0.5)
    wo = jax.random.normal(ks[4], (D, D), dtype=jnp.float32) / (D ** 0.5)
    # conv1.weight in PyTorch is [d_ff, d_model, 1]; stored here as [d_model, d_ff]
    w1 = jax.random.normal(ks[5], (D, DFF), dtype=jnp.float32) / (D ** 0.5)
    # conv2.weight is [d_model, d_ff, 1]; stored as [d_ff, d_model]
    w2 = jax.random.normal(ks[6], (DFF, D), dtype=jnp.float32) / (DFF ** 0.5)

    forward = make_encoder_layer(wq, wk, wv, wo, w1, w2)   # constants built once
    res, attn = forward(x)
    jax.block_until_ready((res, attn))

    res_ref, attn_ref_v = ref_forward(x, wq, wk, wv, wo, w1, w2)
    assert jnp.allclose(res, res_ref, rtol=2e-3, atol=2e-3), "res mismatch"
    assert jnp.allclose(attn, attn_ref_v, rtol=2e-3, atol=2e-3), "attn mismatch"

    print("KERNEL_OK")
</pallas_src>

<mosaic_0001>
module attributes {stable_mosaic.version = 11 : i64} {
  func.func @encoder_layer_kernel(%arg0: memref<32x32xf32, #tpu.memory_space<vmem>>, %arg1: memref<32x128xf32, #tpu.memory_space<vmem>>, %arg2: memref<32x32xf32, #tpu.memory_space<vmem>>, %arg3: memref<32x32xf32, #tpu.memory_space<vmem>>, %arg4: memref<128x32xf32, #tpu.memory_space<vmem>>, %arg5: memref<32x128xf32, #tpu.memory_space<vmem>>, %arg6: memref<128x32xf32, #tpu.memory_space<vmem>>, %arg7: memref<32x32xf32, #tpu.memory_space<vmem>>, %arg8: memref<32x128xf32, #tpu.memory_space<vmem>>, %arg9: memref<32x128xf32, #tpu.memory_space<vmem>>, %arg10: memref<128x128xf32, #tpu.memory_space<vmem>>, %arg11: memref<32x32xf32, #tpu.memory_space<vmem>>, %arg12: memref<32x128xf32, #tpu.memory_space<vmem>>) attributes {dimension_semantics = [], scalar_prefetch = 0 : i64, scratch_operands = 0 : i64, tpu.core_type = #tpu.core_type<tc>} {
    %c0 = arith.constant 0 : index
    %c0_0 = arith.constant 0 : index
    %0 = vector.load %arg0[%c0, %c0_0] : memref<32x32xf32, #tpu.memory_space<vmem>>, vector<32x32xf32>
    %c0_1 = arith.constant 0 : index
    %c0_2 = arith.constant 0 : index
    %1 = vector.load %arg4[%c0_1, %c0_2] : memref<128x32xf32, #tpu.memory_space<vmem>>, vector<32x32xf32>
    %cst = arith.constant dense<0.000000e+00> : vector<32x32xf32>
    %2 = tpu.matmul %0, %1, %cst {dimension_numbers = #tpu.dot_dimension_numbers<[1], [0], [0], [1], [0, 0, 1, 1], [], []>} : vector<32x32xf32>, vector<32x32xf32>, vector<32x32xf32> -> vector<32x32xf32>
    %c32 = arith.constant 32 : index
    %c0_3 = arith.constant 0 : index
    %3 = vector.load %arg4[%c32, %c0_3] : memref<128x32xf32, #tpu.memory_space<vmem>>, vector<32x32xf32>
    %cst_4 = arith.constant dense<0.000000e+00> : vector<32x32xf32>
    %4 = tpu.matmul %0, %3, %cst_4 {dimension_numbers = #tpu.dot_dimension_numbers<[1], [0], [0], [1], [0, 0, 1, 1], [], []>} : vector<32x32xf32>, vector<32x32xf32>, vector<32x32xf32> -> vector<32x32xf32>
    %c64 = arith.constant 64 : index
    %c0_5 = arith.constant 0 : index
    %5 = vector.load %arg4[%c64, %c0_5] : memref<128x32xf32, #tpu.memory_space<vmem>>, vector<32x32xf32>
    %cst_6 = arith.constant dense<0.000000e+00> : vector<32x32xf32>
    %6 = tpu.matmul %0, %5, %cst_6 {dimension_numbers = #tpu.dot_dimension_numbers<[1], [0], [0], [1], [0, 0, 1, 1], [], []>} : vector<32x32xf32>, vector<32x32xf32>, vector<32x32xf32> -> vector<32x32xf32>
    %c96 = arith.constant 96 : index
    %c0_7 = arith.constant 0 : index
    %7 = vector.load %arg4[%c96, %c0_7] : memref<128x32xf32, #tpu.memory_space<vmem>>, vector<32x32xf32>
    %cst_8 = arith.constant dense<0.000000e+00> : vector<32x32xf32>
    %8 = tpu.matmul %0, %7, %cst_8 {dimension_numbers = #tpu.dot_dimension_numbers<[1], [0], [0], [1], [0, 0, 1, 1], [], []>} : vector<32x32xf32>, vector<32x32xf32>, vector<32x32xf32> -> vector<32x32xf32>
    %9 = tpu.concatenate %2, %4, %6, %8 in 0 : vector<32x32xf32>, vector<32x32xf32>, vector<32x32xf32>, vector<32x32xf32> -> vector<128x32xf32>
    %c0_9 = arith.constant 0 : index
    %c0_10 = arith.constant 0 : index
    %10 = vector.load %arg2[%c0_9, %c0_10] : memref<32x32xf32, #tpu.memory_space<vmem>>, vector<32x32xf32>
    %cst_11 = arith.constant dense<0.000000e+00> : vector<32x32xf32>
    %11 = tpu.matmul %0, %10, %cst_11 {dimension_numbers = #tpu.dot_dimension_numbers<[1], [0], [0], [1], [0, 0, 1, 1], [], []>} : vector<32x32xf32>, vector<32x32xf32>, vector<32x32xf32> -> vector<32x32xf32>
    %c0_12 = arith.constant 0 : index
    %c0_13 = arith.constant 0 : index
    %12 = vector.load %arg3[%c0_12, %c0_13] : memref<32x32xf32, #tpu.memory_space<vmem>>, vector<32x32xf32>
    %c0_14 = arith.constant 0 : index
    %c0_15 = arith.constant 0 : index
    %13 = vector.load %arg1[%c0_14, %c0_15] : memref<32x128xf32, #tpu.memory_space<vmem>>, vector<32x128xf32>
    %cst_16 = arith.constant dense<0.000000e+00> : vector<32x128xf32>
    %14 = tpu.matmul %12, %13, %cst_16 {dimension_numbers = #tpu.dot_dimension_numbers<[1], [0], [0], [1], [0, 0, 1, 1], [], []>} : vector<32x32xf32>, vector<32x128xf32>, vector<32x128xf32> -> vector<32x128xf32>
    %c0_17 = arith.constant 0 : index
    %c0_18 = arith.constant 0 : index
    %15 = vector.load %arg8[%c0_17, %c0_18] : memref<32x128xf32, #tpu.memory_space<vmem>>, vector<32x128xf32>
    %16 = arith.mulf %14, %15 : vector<32x128xf32>
    %cst_19 = arith.constant dense<0.000000e+00> : vector<32x128xf32>
    %17 = tpu.matmul %11, %16, %cst_19 {dimension_numbers = #tpu.dot_dimension_numbers<[1], [0], [0], [1], [0, 0, 1, 1], [], []>} : vector<32x32xf32>, vector<32x128xf32>, vector<32x128xf32> -> vector<32x128xf32>
    %c0_20 = arith.constant 0 : index
    %c0_21 = arith.constant 0 : index
    %18 = vector.load %arg9[%c0_20, %c0_21] : memref<32x128xf32, #tpu.memory_space<vmem>>, vector<32x128xf32>
    %19 = arith.addf %17, %18 : vector<32x128xf32>
    %cst_22 = arith.constant dense<0xFF800000> : vector<32xf32>
    %20 = vector.multi_reduction <maximumf>, %19, %cst_22 [1] : vector<32x128xf32> to vector<32xf32>
    %21 = vector.shape_cast %20 : vector<32xf32> to vector<32x1xf32>
    %22 = vector.broadcast %21 : vector<32x1xf32> to vector<32x128xf32>
    %23 = arith.subf %19, %22 : vector<32x128xf32>
    %24 = math.exp %23 : vector<32x128xf32>
    %c0_23 = arith.constant 0 : index
    %c0_24 = arith.constant 0 : index
    %25 = vector.load %arg10[%c0_23, %c0_24] : memref<128x128xf32, #tpu.memory_space<vmem>>, vector<128x128xf32>
    %cst_25 = arith.constant dense<0.000000e+00> : vector<32x128xf32>
    %26 = tpu.matmul %24, %25, %cst_25 {dimension_numbers = #tpu.dot_dimension_numbers<[1], [0], [0], [1], [0, 0, 1, 1], [], []>} : vector<32x128xf32>, vector<128x128xf32>, vector<32x128xf32> -> vector<32x128xf32>
    %27 = tpu.reciprocal %26 {approx = true} : vector<32x128xf32> -> vector<32x128xf32>
    %28 = arith.mulf %26, %27 : vector<32x128xf32>
    %cst_26 = arith.constant 2.000000e+00 : f32
    %29 = vector.broadcast %cst_26 : f32 to vector<32x128xf32>
    %30 = arith.subf %29, %28 : vector<32x128xf32>
    %31 = arith.mulf %27, %30 : vector<32x128xf32>
    %32 = arith.mulf %24, %31 : vector<32x128xf32>
    %c0_27 = arith.constant 0 : index
    %c0_28 = arith.constant 0 : index
    %33 = vector.load %arg12[%c0_27, %c0_28] : memref<32x128xf32, #tpu.memory_space<vmem>>, vector<32x128xf32>
    tpu.vector_store %arg12[%c0_27, %c0_28], %32 {strides = array<i32>} : memref<32x128xf32, #tpu.memory_space<vmem>>, vector<32x128xf32>,
    %cst_29 = arith.constant dense<0.000000e+00> : vector<32x32xf32>
    %34 = tpu.matmul %32, %9, %cst_29 {dimension_numbers = #tpu.dot_dimension_numbers<[1], [0], [0], [1], [0, 0, 1, 1], [], []>} : vector<32x128xf32>, vector<128x32xf32>, vector<32x32xf32> -> vector<32x32xf32>
    %35 = arith.addf %0, %34 : vector<32x32xf32>
    %c0_30 = arith.constant 0 : index
    %c0_31 = arith.constant 0 : index
    %36 = vector.load %arg7[%c0_30, %c0_31] : memref<32x32xf32, #tpu.memory_space<vmem>>, vector<32x32xf32>
    %cst_32 = arith.constant dense<0.000000e+00> : vector<32x32xf32>
    %37 = tpu.matmul %36, %35, %cst_32 {dimension_numbers = #tpu.dot_dimension_numbers<[1], [0], [0], [1], [0, 0, 1, 1], [], []>} : vector<32x32xf32>, vector<32x32xf32>, vector<32x32xf32> -> vector<32x32xf32>
    %c0_33 = arith.constant 0 : index
    %c0_34 = arith.constant 0 : index
    %38 = vector.load %arg5[%c0_33, %c0_34] : memref<32x128xf32, #tpu.memory_space<vmem>>, vector<32x128xf32>
    %cst_35 = arith.constant dense<0.000000e+00> : vector<32x128xf32>
    %39 = tpu.matmul %37, %38, %cst_35 {dimension_numbers = #tpu.dot_dimension_numbers<[1], [0], [0], [1], [0, 0, 1, 1], [], []>} : vector<32x32xf32>, vector<32x128xf32>, vector<32x128xf32> -> vector<32x128xf32>
    %cst_36 = arith.constant 0.000000e+00 : f32
    %40 = vector.broadcast %cst_36 : f32 to vector<32x128xf32>
    %41 = arith.maximumf %39, %40 : vector<32x128xf32>
    %c0_37 = arith.constant 0 : index
    %c0_38 = arith.constant 0 : index
    %42 = vector.load %arg6[%c0_37, %c0_38] : memref<128x32xf32, #tpu.memory_space<vmem>>, vector<128x32xf32>
    %cst_39 = arith.constant dense<0.000000e+00> : vector<32x32xf32>
    %43 = tpu.matmul %41, %42, %cst_39 {dimension_numbers = #tpu.dot_dimension_numbers<[1], [0], [0], [1], [0, 0, 1, 1], [], []>} : vector<32x128xf32>, vector<128x32xf32>, vector<32x32xf32> -> vector<32x32xf32>
    %44 = arith.addf %37, %43 : vector<32x32xf32>
    %cst_40 = arith.constant dense<0.000000e+00> : vector<32x32xf32>
    %45 = tpu.matmul %36, %44, %cst_40 {dimension_numbers = #tpu.dot_dimension_numbers<[1], [0], [0], [1], [0, 0, 1, 1], [], []>} : vector<32x32xf32>, vector<32x32xf32>, vector<32x32xf32> -> vector<32x32xf32>
    %c0_41 = arith.constant 0 : index
    %c0_42 = arith.constant 0 : index
    %46 = vector.load %arg11[%c0_41, %c0_42] : memref<32x32xf32, #tpu.memory_space<vmem>>, vector<32x32xf32>
    tpu.vector_store %arg11[%c0_41, %c0_42], %45 {strides = array<i32>} : memref<32x32xf32, #tpu.memory_space<vmem>>, vector<32x32xf32>,
    return
  }
}

</mosaic_0001>

<llo_original>
// kernel: tile.9
$region0: #{tile.9}
  %s0 = inlined_call_operand.vmem [shape: f32[32,4,32], index: 0, kind: input, shape index: {}]
  %s1 = inlined_call_operand.vmem [shape: f32[32,128], index: 1, kind: output, shape index: {}]
  $region1: #{tile.9} parent=0
    #allocation0 [shape = 'u8[131072]{0}', space=vmem, size = 0x20000, scoped, tag = 'scoped mem for input reshape']
    %s3 = sshllo.u32 0, 4
    %s4 = smul.addr 4, 31
    %s5 = scalar_lea.vmem %s0, %s4
    %v6 = vld [vmem:[%s5] sm:%s3]
    %s7 = scalar_lea.vmem [#allocation0], 248
    %8 = vst [vmem:[%s7] sm:%s3] %v6
    %s9 = smul.addr 4, 30
    %s10 = scalar_lea.vmem %s0, %s9
    %v11 = vld [vmem:[%s10] sm:%s3]
    %s12 = scalar_lea.vmem [#allocation0], 240
    %13 = vst [vmem:[%s12] sm:%s3] %v11
    %s14 = smul.addr 4, 29
    %s15 = scalar_lea.vmem %s0, %s14
    %v16 = vld [vmem:[%s15] sm:%s3]
    %s17 = scalar_lea.vmem [#allocation0], 232
    %18 = vst [vmem:[%s17] sm:%s3] %v16
    %s19 = smul.addr 4, 28
    %s20 = scalar_lea.vmem %s0, %s19
    %v21 = vld [vmem:[%s20] sm:%s3]
    %s22 = scalar_lea.vmem [#allocation0], 224
    %23 = vst [vmem:[%s22] sm:%s3] %v21
    %s24 = smul.addr 4, 27
    %s25 = scalar_lea.vmem %s0, %s24
    %v26 = vld [vmem:[%s25] sm:%s3]
    %s27 = scalar_lea.vmem [#allocation0], 216
    %28 = vst [vmem:[%s27] sm:%s3] %v26
    %s29 = smul.addr 4, 26
    %s30 = scalar_lea.vmem %s0, %s29
    %v31 = vld [vmem:[%s30] sm:%s3]
    %s32 = scalar_lea.vmem [#allocation0], 208
    %33 = vst [vmem:[%s32] sm:%s3] %v31
    %s34 = smul.addr 4, 25
    %s35 = scalar_lea.vmem %s0, %s34
    %v36 = vld [vmem:[%s35] sm:%s3]
    %s37 = scalar_lea.vmem [#allocation0], 200
    %38 = vst [vmem:[%s37] sm:%s3] %v36
    %s39 = smul.addr 4, 24
    %s40 = scalar_lea.vmem %s0, %s39
    %v41 = vld [vmem:[%s40] sm:%s3]
    %s42 = scalar_lea.vmem [#allocation0], 192
    %43 = vst [vmem:[%s42] sm:%s3] %v41
    %s44 = smul.addr 4, 23
    %s45 = scalar_lea.vmem %s0, %s44
    %v46 = vld [vmem:[%s45] sm:%s3]
    %s47 = scalar_lea.vmem [#allocation0], 184
    %48 = vst [vmem:[%s47] sm:%s3] %v46
    %s49 = smul.addr 4, 22
    %s50 = scalar_lea.vmem %s0, %s49
    %v51 = vld [vmem:[%s50] sm:%s3]
    %s52 = scalar_lea.vmem [#allocation0], 176
    %53 = vst [vmem:[%s52] sm:%s3] %v51
    %s54 = smul.addr 4, 21
    %s55 = scalar_lea.vmem %s0, %s54
    %v56 = vld [vmem:[%s55] sm:%s3]
    %s57 = scalar_lea.vmem [#allocation0], 168
    %58 = vst [vmem:[%s57] sm:%s3] %v56
    %s59 = smul.addr 4, 20
    %s60 = scalar_lea.vmem %s0, %s59
    %v61 = vld [vmem:[%s60] sm:%s3]
    %s62 = scalar_lea.vmem [#allocation0], 160
    %63 = vst [vmem:[%s62] sm:%s3] %v61
    %s64 = smul.addr 4, 19
    %s65 = scalar_lea.vmem %s0, %s64
    %v66 = vld [vmem:[%s65] sm:%s3]
    %s67 = scalar_lea.vmem [#allocation0], 152
    %68 = vst [vmem:[%s67] sm:%s3] %v66
    %s69 = smul.addr 4, 18
    %s70 = scalar_lea.vmem %s0, %s69
    %v71 = vld [vmem:[%s70] sm:%s3]
    %s72 = scalar_lea.vmem [#allocation0], 144
    %73 = vst [vmem:[%s72] sm:%s3] %v71
    %s74 = smul.addr 4, 17
    %s75 = scalar_lea.vmem %s0, %s74
    %v76 = vld [vmem:[%s75] sm:%s3]
    %s77 = scalar_lea.vmem [#allocation0], 136
    %78 = vst [vmem:[%s77] sm:%s3] %v76
    %s79 = smul.addr 4, 16
    %s80 = scalar_lea.vmem %s0, %s79
    %v81 = vld [vmem:[%s80] sm:%s3]
    %s82 = scalar_lea.vmem [#allocation0], 128
    %83 = vst [vmem:[%s82] sm:%s3] %v81
    %s84 = smul.addr 4, 15
    %s85 = scalar_lea.vmem %s0, %s84
    %v86 = vld [vmem:[%s85] sm:%s3]
    %s87 = scalar_lea.vmem [#allocation0], 120
    %88 = vst [vmem:[%s87] sm:%s3] %v86
    %s89 = smul.addr 4, 14
    %s90 = scalar_lea.vmem %s0, %s89
    %v91 = vld [vmem:[%s90] sm:%s3]
    %s92 = scalar_lea.vmem [#allocation0], 112
    %93 = vst [vmem:[%s92] sm:%s3] %v91
    %s94 = smul.addr 4, 13
    %s95 = scalar_lea.vmem %s0, %s94
    %v96 = vld [vmem:[%s95] sm:%s3]
    %s97 = scalar_lea.vmem [#allocation0], 104
    %98 = vst [vmem:[%s97] sm:%s3] %v96
    %s99 = smul.addr 4, 12
    %s100 = scalar_lea.vmem %s0, %s99
    %v101 = vld [vmem:[%s100] sm:%s3]
    %s102 = scalar_lea.vmem [#allocation0], 96
    %103 = vst [vmem:[%s102] sm:%s3] %v101
    %s104 = smul.addr 4, 11
    %s105 = scalar_lea.vmem %s0, %s104
    %v106 = vld [vmem:[%s105] sm:%s3]
    %s107 = scalar_lea.vmem [#allocation0], 88
    %108 = vst [vmem:[%s107] sm:%s3] %v106
    %s109 = smul.addr 4, 10
    %s110 = scalar_lea.vmem %s0, %s109
    %v111 = vld [vmem:[%s110] sm:%s3]
    %s112 = scalar_lea.vmem [#allocation0], 80
    %113 = vst [vmem:[%s112] sm:%s3] %v111
    %s114 = smul.addr 4, 9
    %s115 = scalar_lea.vmem %s0, %s114
    %v116 = vld [vmem:[%s115] sm:%s3]
    %s117 = scalar_lea.vmem [#allocation0], 72
    %118 = vst [vmem:[%s117] sm:%s3] %v116
    %s119 = smul.addr 4, 8
    %s120 = scalar_lea.vmem %s0, %s119
    %v121 = vld [vmem:[%s120] sm:%s3]
    %s122 = scalar_lea.vmem [#allocation0], 64
    %123 = vst [vmem:[%s122] sm:%s3] %v121
    %s124 = smul.addr 4, 7
    %s125 = scalar_lea.vmem %s0, %s124
    %v126 = vld [vmem:[%s125] sm:%s3]
    %s127 = scalar_lea.vmem [#allocation0], 56
    %128 = vst [vmem:[%s127] sm:%s3] %v126
    %s129 = smul.addr 4, 6
    %s130 = scalar_lea.vmem %s0, %s129
    %v131 = vld [vmem:[%s130] sm:%s3]
    %s132 = scalar_lea.vmem [#allocation0], 48
    %133 = vst [vmem:[%s132] sm:%s3] %v131
    %s134 = smul.addr 4, 5
    %s135 = scalar_lea.vmem %s0, %s134
    %v136 = vld [vmem:[%s135] sm:%s3]
    %s137 = scalar_lea.vmem [#allocation0], 40
    %138 = vst [vmem:[%s137] sm:%s3] %v136
    %s139 = smul.addr 4, 4
    %s140 = scalar_lea.vmem %s0, %s139
    %v141 = vld [vmem:[%s140] sm:%s3]
    %s142 = scalar_lea.vmem [#allocation0], 32
    %143 = vst [vmem:[%s142] sm:%s3] %v141
    %s144 = smul.addr 4, 3
    %s145 = scalar_lea.vmem %s0, %s144
    %v146 = vld [vmem:[%s145] sm:%s3]
    %s147 = scalar_lea.vmem [#allocation0], 24
    %148 = vst [vmem:[%s147] sm:%s3] %v146
    %s149 = smul.addr 4, 2
    %s150 = scalar_lea.vmem %s0, %s149
    %v151 = vld [vmem:[%s150] sm:%s3]
    %s152 = scalar_lea.vmem [#allocation0], 16
    %153 = vst [vmem:[%s152] sm:%s3] %v151
    %s154 = scalar_lea.vmem %s0, 4
    %v155 = vld [vmem:[%s154] sm:%s3]
    %s156 = scalar_lea.vmem [#allocation0], 8
    %157 = vst [vmem:[%s156] sm:%s3] %v155
    %v158 = vld [vmem:[%s0] sm:%s3]
    %159 = vst [vmem:[#allocation0] sm:%s3] %v158
    %v160 = vld [vmem:[#allocation0] ss:$8 sm:$0xf]
    %v161 = vld [vmem:[#allocation0] ss:$8 sm:$0xf0]
    %vm162 = vcmask 1047556
    %v163 = vsel %vm162, %v161, %v160
    %vm164 = vcmask 261120
    %165 = vst.msk [vmem:[%s1] sm:$0xff] %vm164, %v163
    %s166 = scalar_lea.vmem [#allocation0], 64
    %v167 = vld [vmem:[%s166] ss:$8 sm:$0xf]
    %s168 = scalar_lea.vmem [#allocation0], 64
    %v169 = vld [vmem:[%s168] ss:$8 sm:$0xf0]
    %vm170 = vcmask 1047556
    %v171 = vsel %vm170, %v169, %v167
    %vm172 = vcmask 261120
    %s173 = scalar_lea.vmem %s1, 8
    %174 = vst.msk [vmem:[%s173] sm:$0xff] %vm172, %v171
    %s175 = scalar_lea.vmem [#allocation0], 128
    %v176 = vld [vmem:[%s175] ss:$8 sm:$0xf]
    %s177 = scalar_lea.vmem [#allocation0], 128
    %v178 = vld [vmem:[%s177] ss:$8 sm:$0xf0]
    %vm179 = vcmask 1047556
    %v180 = vsel %vm179, %v178, %v176
    %vm181 = vcmask 261120
    %s182 = scalar_lea.vmem %s1, 16
    %183 = vst.msk [vmem:[%s182] sm:$0xff] %vm181, %v180
    %s184 = scalar_lea.vmem [#allocation0], 192
    %v185 = vld [vmem:[%s184] ss:$8 sm:$0xf]
    %s186 = scalar_lea.vmem [#allocation0], 192
    %v187 = vld [vmem:[%s186] ss:$8 sm:$0xf0]
    %vm188 = vcmask 1047556
    %v189 = vsel %vm188, %v187, %v185
    %vm190 = vcmask 261120
    %s191 = scalar_lea.vmem %s1, 24
    %192 = vst.msk [vmem:[%s191] sm:$0xff] %vm190, %v189
    %s193 = scalar_lea.vmem [#allocation0], 3
    %v194 = vld [vmem:[%s193] ss:$8 sm:$0xf]
    %s195 = scalar_lea.vmem [#allocation0], 3
    %v196 = vld [vmem:[%s195] ss:$8 sm:$0xf0]
    %vm197 = vcmask 1047556
    %v198 = vsel %vm197, %v196, %v194
    %199 = vrot.lane.b32.xlu0 %v198, 96
    %v200 = vpop.permute.xlu0 %199
    %vm201 = vcmask 1048320
    %202 = vst.msk [vmem:[%s1] sm:$0xff] %vm201, %v200
    %s203 = scalar_lea.vmem [#allocation0], 67
    %v204 = vld [vmem:[%s203] ss:$8 sm:$0xf]
    %s205 = scalar_lea.vmem [#allocation0], 67
    %v206 = vld [vmem:[%s205] ss:$8 sm:$0xf0]
    %vm207 = vcmask 1047556
    %v208 = vsel %vm207, %v206, %v204
    %209 = vrot.lane.b32.xlu0 %v208, 96
    %v210 = vpop.permute.xlu0 %209
    %vm211 = vcmask 1048320
    %s212 = scalar_lea.vmem %s1, 8
    %213 = vst.msk [vmem:[%s212] sm:$0xff] %vm211, %v210
    %s214 = scalar_lea.vmem [#allocation0], 131
    %v215 = vld [vmem:[%s214] ss:$8 sm:$0xf]
    %s216 = scalar_lea.vmem [#allocation0], 131
    %v217 = vld [vmem:[%s216] ss:$8 sm:$0xf0]
    %vm218 = vcmask 1047556
    %v219 = vsel %vm218, %v217, %v215
    %220 = vrot.lane.b32.xlu0 %v219, 96
    %v221 = vpop.permute.xlu0 %220
    %vm222 = vcmask 1048320
    %s223 = scalar_lea.vmem %s1, 16
    %224 = vst.msk [vmem:[%s223] sm:$0xff] %vm222, %v221
    %s225 = scalar_lea.vmem [#allocation0], 195
    %v226 = vld [vmem:[%s225] ss:$8 sm:$0xf]
    %s227 = scalar_lea.vmem [#allocation0], 195
    %v228 = vld [vmem:[%s227] ss:$8 sm:$0xf0]
    %vm229 = vcmask 1047556
    %v230 = vsel %vm229, %v228, %v226
    %231 = vrot.lane.b32.xlu0 %v230, 96
    %v232 = vpop.permute.xlu0 %231
    %vm233 = vcmask 1048320
    %s234 = scalar_lea.vmem %s1, 24
    %235 = vst.msk [vmem:[%s234] sm:$0xff] %vm233, %v232
    %s236 = scalar_lea.vmem [#allocation0], 2
    %v237 = vld [vmem:[%s236] ss:$8 sm:$0xf]
    %s238 = scalar_lea.vmem [#allocation0], 2
    %v239 = vld [vmem:[%s238] ss:$8 sm:$0xf0]
    %vm240 = vcmask 1047556
    %v241 = vsel %vm240, %v239, %v237
    %242 = vrot.lane.b32.xlu0 %v241, 64
    %v243 = vpop.permute.xlu0 %242
    %vm244 = vcmask 785920
    %245 = vst.msk [vmem:[%s1] sm:$0xff] %vm244, %v243
    %s246 = scalar_lea.vmem [#allocation0], 66
    %v247 = vld [vmem:[%s246] ss:$8 sm:$0xf]
    %s248 = scalar_lea.vmem [#allocation0], 66
    %v249 = vld [vmem:[%s248] ss:$8 sm:$0xf0]
    %vm250 = vcmask 1047556
    %v251 = vsel %vm250, %v249, %v247
    %252 = vrot.lane.b32.xlu0 %v251, 64
    %v253 = vpop.permute.xlu0 %252
    %vm254 = vcmask 785920
    %s255 = scalar_lea.vmem %s1, 8
    %256 = vst.msk [vmem:[%s255] sm:$0xff] %vm254, %v253
    %s257 = scalar_lea.vmem [#allocation0], 130
    %v258 = vld [vmem:[%s257] ss:$8 sm:$0xf]
    %s259 = scalar_lea.vmem [#allocation0], 130
    %v260 = vld [vmem:[%s259] ss:$8 sm:$0xf0]
    %vm261 = vcmask 1047556
    %v262 = vsel %vm261, %v260, %v258
    %263 = vrot.lane.b32.xlu0 %v262, 64
    %v264 = vpop.permute.xlu0 %263
    %vm265 = vcmask 785920
    %s266 = scalar_lea.vmem %s1, 16
    %267 = vst.msk [vmem:[%s266] sm:$0xff] %vm265, %v264
    %s268 = scalar_lea.vmem [#allocation0], 194
    %v269 = vld [vmem:[%s268] ss:$8 sm:$0xf]
    %s270 = scalar_lea.vmem [#allocation0], 194
    %v271 = vld [vmem:[%s270] ss:$8 sm:$0xf0]
    %vm272 = vcmask 1047556
    %v273 = vsel %vm272, %v271, %v269
    %274 = vrot.lane.b32.xlu0 %v273, 64
    %v275 = vpop.permute.xlu0 %274
    %vm276 = vcmask 785920
    %s277 = scalar_lea.vmem %s1, 24
    %278 = vst.msk [vmem:[%s277] sm:$0xff] %vm276, %v275
    %s279 = scalar_lea.vmem [#allocation0], 1
    %v280 = vld [vmem:[%s279] ss:$8 sm:$0xf]
    %s281 = scalar_lea.vmem [#allocation0], 1
    %v282 = vld [vmem:[%s281] ss:$8 sm:$0xf0]
    %vm283 = vcmask 1047556
    %v284 = vsel %vm283, %v282, %v280
    %285 = vrot.lane.b32.xlu0 %v284, 32
    %v286 = vpop.permute.xlu0 %285
    %vm287 = vcmask 523520
    %288 = vst.msk [vmem:[%s1] sm:$0xff] %vm287, %v286
    %s289 = scalar_lea.vmem [#allocation0], 65
    %v290 = vld [vmem:[%s289] ss:$8 sm:$0xf]
    %s291 = scalar_lea.vmem [#allocation0], 65
    %v292 = vld [vmem:[%s291] ss:$8 sm:$0xf0]
    %vm293 = vcmask 1047556
    %v294 = vsel %vm293, %v292, %v290
    %295 = vrot.lane.b32.xlu0 %v294, 32
    %v296 = vpop.permute.xlu0 %295
    %vm297 = vcmask 523520
    %s298 = scalar_lea.vmem %s1, 8
    %299 = vst.msk [vmem:[%s298] sm:$0xff] %vm297, %v296
    %s300 = scalar_lea.vmem [#allocation0], 129
    %v301 = vld [vmem:[%s300] ss:$8 sm:$0xf]
    %s302 = scalar_lea.vmem [#allocation0], 129
    %v303 = vld [vmem:[%s302] ss:$8 sm:$0xf0]
    %vm304 = vcmask 1047556
    %v305 = vsel %vm304, %v303, %v301
    %306 = vrot.lane.b32.xlu0 %v305, 32
    %v307 = vpop.permute.xlu0 %306
    %vm308 = vcmask 523520
    %s309 = scalar_lea.vmem %s1, 16
    %310 = vst.msk [vmem:[%s309] sm:$0xff] %vm308, %v307
    %s311 = scalar_lea.vmem [#allocation0], 193
    %v312 = vld [vmem:[%s311] ss:$8 sm:$0xf]
    %s313 = scalar_lea.vmem [#allocation0], 193
    %v314 = vld [vmem:[%s313] ss:$8 sm:$0xf0]
    %vm315 = vcmask 1047556
    %v316 = vsel %vm315, %v314, %v312
    %317 = vrot.lane.b32.xlu0 %v316, 32
    %v318 = vpop.permute.xlu0 %317
    %vm319 = vcmask 523520
    %s320 = scalar_lea.vmem %s1, 24
    %321 = vst.msk [vmem:[%s320] sm:$0xff] %vm319, %v318

// kernel: forward.1
$region0: #{forward.1}
  #allocation0 [shape = 'u32[]', space=smem, size = 0x4, offset = 0x4, fixed_abs, tag = 'smem constant byte address 0x4 - core index']
  #allocation1 [shape = 'u32[144,128]{1,0:T(1,128)}', space=vmem, size = 0x12000, scoped, tag = 'internal scratch']
  %s0 = inlined_call_operand.hbm [shape: f32[32,32], index: 0, kind: input, shape index: {}]
  %s1 = inlined_call_operand.vmem [shape: f32[32,128], index: 1, kind: input, shape index: {}]
  %s2 = inlined_call_operand.hbm [shape: f32[32,32], index: 2, kind: input, shape index: {}]
  %s3 = inlined_call_operand.hbm [shape: f32[32,32], index: 3, kind: input, shape index: {}]
  %s4 = inlined_call_operand.vmem [shape: f32[128,32], index: 4, kind: input, shape index: {}]
  %s5 = inlined_call_operand.hbm [shape: f32[32,128], index: 5, kind: input, shape index: {}]
  %s6 = inlined_call_operand.vmem [shape: f32[128,32], index: 6, kind: input, shape index: {}]
  %s7 = inlined_call_operand.hbm [shape: f32[32,32], index: 7, kind: input, shape index: {}]
  %s8 = inlined_call_operand.hbm [shape: f32[32,128], index: 8, kind: input, shape index: {}]
  %s9 = inlined_call_operand.vmem [shape: f32[32,128], index: 9, kind: input, shape index: {}]
  %s10 = inlined_call_operand.vmem [shape: f32[128,128], index: 10, kind: input, shape index: {}]
  %s11 = inlined_call_operand.hbm [shape: f32[32,32], index: 11, kind: output, shape index: {0}]
  %s12 = inlined_call_operand.vmem [shape: f32[32,128], index: 12, kind: output, shape index: {1}]
  %13 = xla_tuple %s11, %s12
  %s14 = sld [smem:[#allocation0]]
  $region86: #{forward.1} parent=0
    _
  %s16 = ssub.s32 1, %s14
  %s17 = scalar_select 0, %s16, %s14
  $region1: #{forward.1} parent=0
    #allocation2 [shape = 'u8[16384]{0}', space=vmem, size = 0x4000, scoped, tag = 'input window, operand 0, single buffered']
    #allocation3 [shape = 's32[1]{0}', space=sflag, size = 0x4, scoped, tag = 'scoped memory for forward.1']
    #allocation4 [shape = 's32[1]{0}', space=sflag, size = 0x4, scoped, tag = 'scoped memory for forward.1']
    #allocation5 [shape = 'u8[16384]{0}', space=vmem, size = 0x4000, scoped, tag = 'input window, operand 2, single buffered']
    #allocation6 [shape = 's32[1]{0}', space=sflag, size = 0x4, scoped, tag = 'scoped memory for forward.1']
    #allocation7 [shape = 'u8[16384]{0}', space=vmem, size = 0x4000, scoped, tag = 'input window, operand 3, single buffered']
    #allocation8 [shape = 'u8[16384]{0}', space=vmem, size = 0x4000, scoped, tag = 'input window, operand 5, single buffered']
    #allocation9 [shape = 's32[1]{0}', space=sflag, size = 0x4, scoped, tag = 'scoped memory for forward.1']
    #allocation10 [shape = 'u8[16384]{0}', space=vmem, size = 0x4000, scoped, tag = 'input window, operand 7, single buffered']
    #allocation11 [shape = 'u8[16384]{0}', space=vmem, size = 0x4000, scoped, tag = 'input window, operand 8, single buffered']
    #allocation12 [shape = 's32[1]{0}', space=sflag, size = 0x4, scoped, tag = 'scoped memory for forward.1']
    #allocation13 [shape = 'u8[16384]{0}', space=vmem, size = 0x4000, scoped, tag = 'output window, operand 0, single buffered']
    %18 = vsyncpa [#allocation3], 0
    %19 = vsyncpa [#allocation6], 0
    %20 = vsyncpa [#allocation9], 0
    %21 = vsyncpa [#allocation12], 0
    %22 = vsyncpa [#allocation4], 0
    // Predicated region
    $region2: #{forward.1} parent=1 // pred_check
      _
    $region3: #{forward.1} parent=1 // pred_check_branch
      %24 = sbr.rel (0) target = $region5
    $region4: #{forward.1} parent=1 // pred_region
      %s26 = ssub.s32 512, 512
      %27 = vsyncadd [#allocation3], %s26
      %s28 = sshll.u32 [#allocation2], 4
      %s29 = int_to_ptr.vmem [resolvable:$true] %s28
      %34 = dma.hbm_to_vmem [thread:$0]  %s0, 512, %s29, [#allocation3], 128, 128, 8
    $region5: #{forward.1} parent=1 // pred_fallthru
      _
    // Predicated region
    $region6: #{forward.1} parent=1 // pred_check
      _
    $region7: #{forward.1} parent=1 // pred_check_branch
      %36 = sbr.rel (0) target = $region9
    $region8: #{forward.1} parent=1 // pred_region
      _
    $region9: #{forward.1} parent=1 // pred_fallthru
      _
    // Predicated region
    $region10: #{forward.1} parent=1 // pred_check
      _
    $region11: #{forward.1} parent=1 // pred_check_branch
      %38 = sbr.rel (0) target = $region13
    $region12: #{forward.1} parent=1 // pred_region
      %s40 = ssub.s32 512, 512
      %41 = vsyncadd [#allocation6], %s40
      %s42 = sshll.u32 [#allocation5], 4
      %s43 = int_to_ptr.vmem [resolvable:$true] %s42
      %48 = dma.hbm_to_vmem [thread:$0]  %s2, 512, %s43, [#allocation6], 128, 128, 8
    $region13: #{forward.1} parent=1 // pred_fallthru
      _
    // Predicated region
    $region14: #{forward.1} parent=1 // pred_check
      _
    $region15: #{forward.1} parent=1 // pred_check_branch
      %50 = sbr.rel (0) target = $region17
    $region16: #{forward.1} parent=1 // pred_region
      %s52 = ssub.s32 512, 512
      %53 = vsyncadd [#allocation6], %s52
      %s54 = sshll.u32 [#allocation7], 4
      %s55 = int_to_ptr.vmem [resolvable:$true] %s54
      %60 = dma.hbm_to_vmem [thread:$0]  %s3, 512, %s55, [#allocation6], 128, 128, 8
    $region17: #{forward.1} parent=1 // pred_fallthru
      _
    // Predicated region
    $region18: #{forward.1} parent=1 // pred_check
      _
    $region19: #{forward.1} parent=1 // pred_check_branch
      %62 = sbr.rel (0) target = $region21
    $region20: #{forward.1} parent=1 // pred_region
      _
    $region21: #{forward.1} parent=1 // pred_fallthru
      _
    // Predicated region
    $region22: #{forward.1} parent=1 // pred_check
      _
    $region23: #{forward.1} parent=1 // pred_check_branch
      %64 = sbr.rel (0) target = $region25
    $region24: #{forward.1} parent=1 // pred_region
      %s66 = ssub.s32 512, 512
      %67 = vsyncadd [#allocation9], %s66
      %s68 = sshll.u32 [#allocation8], 4
      %s69 = int_to_ptr.vmem [resolvable:$true] %s68
      %74 = dma.hbm_to_vmem [thread:$0]  %s5, 512, %s69, [#allocation9], 128, 128, 8
    $region25: #{forward.1} parent=1 // pred_fallthru
      _
    // Predicated region
    $region26: #{forward.1} parent=1 // pred_check
      _
    $region27: #{forward.1} parent=1 // pred_check_branch
      %76 = sbr.rel (0) target = $region29
    $region28: #{forward.1} parent=1 // pred_region
      _
    $region29: #{forward.1} parent=1 // pred_fallthru
      _
    // Predicated region
    $region30: #{forward.1} parent=1 // pred_check
      _
    $region31: #{forward.1} parent=1 // pred_check_branch
      %78 = sbr.rel (0) target = $region33
    $region32: #{forward.1} parent=1 // pred_region
      %s80 = ssub.s32 512, 512
      %81 = vsyncadd [#allocation9], %s80
      %s82 = sshll.u32 [#allocation10], 4
      %s83 = int_to_ptr.vmem [resolvable:$true] %s82
      %88 = dma.hbm_to_vmem [thread:$0]  %s7, 512, %s83, [#allocation9], 128, 128, 8
    $region33: #{forward.1} parent=1 // pred_fallthru
      _
    // Predicated region
    $region34: #{forward.1} parent=1 // pred_check
      _
    $region35: #{forward.1} parent=1 // pred_check_branch
      %90 = sbr.rel (0) target = $region37
    $region36: #{forward.1} parent=1 // pred_region
      %s92 = ssub.s32 512, 512
      %93 = vsyncadd [#allocation12], %s92
      %s94 = sshll.u32 [#allocation11], 4
      %s95 = int_to_ptr.vmem [resolvable:$true] %s94
      %100 = dma.hbm_to_vmem [thread:$0]  %s8, 512, %s95, [#allocation12], 128, 128, 8
    $region37: #{forward.1} parent=1 // pred_fallthru
      _
    // Predicated region
    $region38: #{forward.1} parent=1 // pred_check
      _
    $region39: #{forward.1} parent=1 // pred_check_branch
      %102 = sbr.rel (0) target = $region41
    $region40: #{forward.1} parent=1 // pred_region
      _
    $region41: #{forward.1} parent=1 // pred_fallthru
      _
    // Predicated region
    $region42: #{forward.1} parent=1 // pred_check
      _
    $region43: #{forward.1} parent=1 // pred_check_branch
      %104 = sbr.rel (0) target = $region45
    $region44: #{forward.1} parent=1 // pred_region
      _
    $region45: #{forward.1} parent=1 // pred_fallthru
      _
    // Predicated region
    $region46: #{forward.1} parent=1 // pred_check
      _
    $region47: #{forward.1} parent=1 // pred_check_branch
      %106 = sbr.rel (0) target = $region49
    $region48: #{forward.1} parent=1 // pred_region
      %107 = dma.done [#allocation3], 512
    $region49: #{forward.1} parent=1 // pred_fallthru
      _
    // Predicated region
    $region50: #{forward.1} parent=1 // pred_check
      _
    $region51: #{forward.1} parent=1 // pred_check_branch
      %109 = sbr.rel (0) target = $region53
    $region52: #{forward.1} parent=1 // pred_region
      %110 = dma.done [#allocation6], 512
    $region53: #{forward.1} parent=1 // pred_fallthru
      _
    // Predicated region
    $region54: #{forward.1} parent=1 // pred_check
      _
    $region55: #{forward.1} parent=1 // pred_check_branch
      %112 = sbr.rel (0) target = $region57
    $region56: #{forward.1} parent=1 // pred_region
      %113 = dma.done [#allocation6], 512
    $region57: #{forward.1} parent=1 // pred_fallthru
      _
    // Predicated region
    $region58: #{forward.1} parent=1 // pred_check
      _
    $region59: #{forward.1} parent=1 // pred_check_branch
      %115 = sbr.rel (0) target = $region61
    $region60: #{forward.1} parent=1 // pred_region
      %116 = dma.done [#allocation9], 512
    $region61: #{forward.1} parent=1 // pred_fallthru
      _
    // Predicated region
    $region62: #{forward.1} parent=1 // pred_check
      _
    $region63: #{forward.1} parent=1 // pred_check_branch
      %118 = sbr.rel (0) target = $region65
    $region64: #{forward.1} parent=1 // pred_region
      %119 = dma.done [#allocation9], 512
    $region65: #{forward.1} parent=1 // pred_fallthru
      _
    // Predicated region
    $region66: #{forward.1} parent=1 // pred_check
      _
    $region67: #{forward.1} parent=1 // pred_check_branch
      %121 = sbr.rel (0) target = $region69
    $region68: #{forward.1} parent=1 // pred_region
      %122 = dma.done [#allocation12], 512
    $region69: #{forward.1} parent=1 // pred_fallthru
      _
    %v123 = vld [vmem:[#allocation2] sm:$0xff]
    %v124 = vld [vmem:[#allocation2 + $0x8] sm:$0xff]
    %v125 = vld [vmem:[#allocation2 + $0x10] sm:$0xff]
    %v126 = vld [vmem:[#allocation2 + $0x18] sm:$0xff]
    %v127 = vld [vmem:[%s4] sm:$0xff]
    %v128 = vld [vmem:[%s4 + $0x8] sm:$0xff]
    %v129 = vld [vmem:[%s4 + $0x10] sm:$0xff]
    %v130 = vld [vmem:[%s4 + $0x18] sm:$0xff]
    %vm131 = vcmask 261120
    %v133 = vsel %vm131, %v123, 0
    %v136 = vsel %vm131, %v124, 0
    %v139 = vsel %vm131, %v125, 0
    %v142 = vsel %vm131, %v126, 0
    %144 = vmatprep.subr.mxu0 0.0
    %145 = vmatpush1.msra.mxu0 %v127
    %146 = vmatprep.subr.mxu0 0.0
    %147 = vmatpush1.msra.mxu0 %v128
    %148 = vmatprep.subr.mxu0 0.0
    %149 = vmatpush1.msra.mxu0 %v129
    %150 = vmatprep.subr.mxu0 0.0
    %151 = vmatpush1.msra.mxu0 %v130
    %152 = vmatprep.subr.mxu0 0.0
    %153 = vmatpush1.msra.mxu0 0.0
    %154 = vmatprep.subr.mxu0 0.0
    %155 = vmatpush1.msra.mxu0 0.0
    %156 = vmatprep.subr.mxu0 0.0
    %157 = vmatpush1.msra.mxu0 0.0
    %158 = vmatprep.subr.mxu0 0.0
    %159 = vmatpush1.msra.mxu0 0.0
    %160 = vmatprep.subr.mxu0 0.0
    %161 = vmatpush1.msra.mxu0 0.0
    %162 = vmatprep.subr.mxu0 0.0
    %163 = vmatpush1.msra.mxu0 0.0
    %164 = vmatprep.subr.mxu0 0.0
    %165 = vmatpush1.msra.mxu0 0.0
    %166 = vmatprep.subr.mxu0 0.0
    %167 = vmatpush1.msra.mxu0 0.0
    %168 = vmatprep.subr.mxu0 0.0
    %169 = vmatpush1.msra.mxu0 0.0
    %170 = vmatprep.subr.mxu0 0.0
    %171 = vmatpush1.msra.mxu0 0.0
    %172 = vmatprep.subr.mxu0 0.0
    %173 = vmatpush1.msra.mxu0 0.0
    %174 = vmatprep.subr.mxu0 0.0
    %175 = vmatpush1.msra.mxu0 0.0
    %176 = vmatprep.subr.mxu0 0.0
    %177 = vmatpush1.msra.mxu0 0.0
    %178 = vmatprep.subr.mxu0 0.0
    %179 = vmatpush1.msra.mxu0 0.0
    %180 = vmatprep.subr.mxu0 0.0
    %181 = vmatpush1.msra.mxu0 0.0
    %182 = vmatprep.subr.mxu0 0.0
    %183 = vmatpush1.msra.mxu0 0.0
    %184 = vmatprep.subr.mxu0 0.0
    %185 = vmatpush1.msra.mxu0 0.0
    %186 = vmatprep.subr.mxu0 0.0
    %187 = vmatpush1.msra.mxu0 0.0
    %188 = vmatprep.subr.mxu0 0.0
    %189 = vmatpush1.msra.mxu0 0.0
    %190 = vmatprep.subr.mxu0 0.0
    %191 = vmatpush1.msra.mxu0 0.0
    %192 = vmatprep.subr.mxu0 0.0
    %193 = vmatpush1.msra.mxu0 0.0
    %194 = vmatprep.subr.mxu0 0.0
    %195 = vmatpush1.msra.mxu0 0.0
    %196 = vmatprep.subr.mxu0 0.0
    %197 = vmatpush1.msra.mxu0 0.0
    %198 = vmatprep.subr.mxu0 0.0
    %199 = vmatpush1.msra.mxu0 0.0
    %200 = vmatprep.subr.mxu0 0.0
    %201 = vmatpush1.msra.mxu0 0.0
    %202 = vmatprep.subr.mxu0 0.0
    %203 = vmatpush1.msra.mxu0 0.0
    %204 = vmatprep.subr.mxu0 0.0
    %205 = vmatpush1.msra.mxu0 0.0
    %206 = vmatprep.subr.mxu0 0.0
    %207 = vmatpush1.msra.mxu0 0.0
    %208 = vmatprep.mubr.f32.mxu0 0.0
    %209 = vmatmul.mubr.f32.gmra.mrb[0].mxu0 %v133
    %v210 = vpop.f32.mrb[0].mxu0
    %v211 = vadd.f32 0.0, %v210
    %v212 = vpop.f32.mrb[0].mxu0
    %213 = vmatprep.mubr.f32.mxu0 0.0
    %214 = vmatmul.mubr.f32.gmra.mrb[0].mxu0 %v136
    %v215 = vpop.f32.mrb[0].mxu0
    %v216 = vadd.f32 0.0, %v215
    %v217 = vpop.f32.mrb[0].mxu0
    %218 = vmatprep.mubr.f32.mxu0 0.0
    %219 = vmatmul.mubr.f32.gmra.mrb[0].mxu0 %v139
    %v220 = vpop.f32.mrb[0].mxu0
    %v221 = vadd.f32 0.0, %v220
    %v222 = vpop.f32.mrb[0].mxu0
    %223 = vmatprep.mubr.f32.mxu0 0.0
    %224 = vmatmul.mubr.f32.gmra.mrb[0].mxu0 %v142
    %v225 = vpop.f32.mrb[0].mxu0
    %v226 = vadd.f32 0.0, %v225
    %v227 = vpop.f32.mrb[0].mxu0
    %228 = vdwg.mxu0
    %v229 = vld [vmem:[%s4 + $0x20] sm:$0xff]
    %v230 = vld [vmem:[%s4 + $0x28] sm:$0xff]
    %v231 = vld [vmem:[%s4 + $0x30] sm:$0xff]
    %v232 = vld [vmem:[%s4 + $0x38] sm:$0xff]
    %233 = vmatprep.subr.mxu0 0.0
    %234 = vmatpush1.msra.mxu0 %v229
    %235 = vmatprep.subr.mxu0 0.0
    %236 = vmatpush1.msra.mxu0 %v230
    %237 = vmatprep.subr.mxu0 0.0
    %238 = vmatpush1.msra.mxu0 %v231
    %239 = vmatprep.subr.mxu0 0.0
    %240 = vmatpush1.msra.mxu0 %v232
    %241 = vmatprep.subr.mxu0 0.0
    %242 = vmatpush1.msra.mxu0 0.0
    %243 = vmatprep.subr.mxu0 0.0
    %244 = vmatpush1.msra.mxu0 0.0
    %245 = vmatprep.subr.mxu0 0.0
    %246 = vmatpush1.msra.mxu0 0.0
    %247 = vmatprep.subr.mxu0 0.0
    %248 = vmatpush1.msra.mxu0 0.0
    %249 = vmatprep.subr.mxu0 0.0
    %250 = vmatpush1.msra.mxu0 0.0
    %251 = vmatprep.subr.mxu0 0.0
    %252 = vmatpush1.msra.mxu0 0.0
    %253 = vmatprep.subr.mxu0 0.0
    %254 = vmatpush1.msra.mxu0 0.0
    %255 = vmatprep.subr.mxu0 0.0
    %256 = vmatpush1.msra.mxu0 0.0
    %257 = vmatprep.subr.mxu0 0.0
    %258 = vmatpush1.msra.mxu0 0.0
    %259 = vmatprep.subr.mxu0 0.0
    %260 = vmatpush1.msra.mxu0 0.0
    %261 = vmatprep.subr.mxu0 0.0
    %262 = vmatpush1.msra.mxu0 0.0
    %263 = vmatprep.subr.mxu0 0.0
    %264 = vmatpush1.msra.mxu0 0.0
    %265 = vmatprep.subr.mxu0 0.0
    %266 = vmatpush1.msra.mxu0 0.0
    %267 = vmatprep.subr.mxu0 0.0
    %268 = vmatpush1.msra.mxu0 0.0
    %269 = vmatprep.subr.mxu0 0.0
    %270 = vmatpush1.msra.mxu0 0.0
    %271 = vmatprep.subr.mxu0 0.0
    %272 = vmatpush1.msra.mxu0 0.0
    %273 = vmatprep.subr.mxu0 0.0
    %274 = vmatpush1.msra.mxu0 0.0
    %275 = vmatprep.subr.mxu0 0.0
    %276 = vmatpush1.msra.mxu0 0.0
    %277 = vmatprep.subr.mxu0 0.0
    %278 = vmatpush1.msra.mxu0 0.0
    %279 = vmatprep.subr.mxu0 0.0
    %280 = vmatpush1.msra.mxu0 0.0
    %281 = vmatprep.subr.mxu0 0.0
    %282 = vmatpush1.msra.mxu0 0.0
    %283 = vmatprep.subr.mxu0 0.0
    %284 = vmatpush1.msra.mxu0 0.0
    %285 = vmatprep.subr.mxu0 0.0
    %286 = vmatpush1.msra.mxu0 0.0
    %287 = vmatprep.subr.mxu0 0.0
    %288 = vmatpush1.msra.mxu0 0.0
    %289 = vmatprep.subr.mxu0 0.0
    %290 = vmatpush1.msra.mxu0 0.0
    %291 = vmatprep.subr.mxu0 0.0
    %292 = vmatpush1.msra.mxu0 0.0
    %293 = vmatprep.subr.mxu0 0.0
    %294 = vmatpush1.msra.mxu0 0.0
    %295 = vmatprep.subr.mxu0 0.0
    %296 = vmatpush1.msra.mxu0 0.0
    %297 = vmatprep.mubr.f32.mxu0 0.0
    %298 = vmatmul.mubr.f32.gmra.mrb[0].mxu0 %v133
    %v299 = vpop.f32.mrb[0].mxu0
    %v300 = vadd.f32 0.0, %v299
    %v301 = vpop.f32.mrb[0].mxu0
    %302 = vmatprep.mubr.f32.mxu0 0.0
    %303 = vmatmul.mubr.f32.gmra.mrb[0].mxu0 %v136
    %v304 = vpop.f32.mrb[0].mxu0
    %v305 = vadd.f32 0.0, %v304
    %v306 = vpop.f32.mrb[0].mxu0
    %307 = vmatprep.mubr.f32.mxu0 0.0
    %308 = vmatmul.mubr.f32.gmra.mrb[0].mxu0 %v139
    %v309 = vpop.f32.mrb[0].mxu0
    %v310 = vadd.f32 0.0, %v309
    %v311 = vpop.f32.mrb[0].mxu0
    %312 = vmatprep.mubr.f32.mxu0 0.0
    %313 = vmatmul.mubr.f32.gmra.mrb[0].mxu0 %v142
    %v314 = vpop.f32.mrb[0].mxu0
    %v315 = vadd.f32 0.0, %v314
    %v316 = vpop.f32.mrb[0].mxu0
    %317 = vdwg.mxu0
    %v318 = vld [vmem:[%s4 + $0x40] sm:$0xff]
    %v319 = vld [vmem:[%s4 + $0x48] sm:$0xff]
    %v320 = vld [vmem:[%s4 + $0x50] sm:$0xff]
    %v321 = vld [vmem:[%s4 + $0x58] sm:$0xff]
    %322 = vmatprep.subr.mxu0 0.0
    %323 = vmatpush1.msra.mxu0 %v318
    %324 = vmatprep.subr.mxu0 0.0
    %325 = vmatpush1.msra.mxu0 %v319
    %326 = vmatprep.subr.mxu0 0.0
    %327 = vmatpush1.msra.mxu0 %v320
    %328 = vmatprep.subr.mxu0 0.0
    %329 = vmatpush1.msra.mxu0 %v321
    %330 = vmatprep.subr.mxu0 0.0
    %331 = vmatpush1.msra.mxu0 0.0
    %332 = vmatprep.subr.mxu0 0.0
    %333 = vmatpush1.msra.mxu0 0.0
    %334 = vmatprep.subr.mxu0 0.0
    %335 = vmatpush1.msra.mxu0 0.0
    %336 = vmatprep.subr.mxu0 0.0
    %337 = vmatpush1.msra.mxu0 0.0
    %338 = vmatprep.subr.mxu0 0.0
    %339 = vmatpush1.msra.mxu0 0.0
    %340 = vmatprep.subr.mxu0 0.0
    %341 = vmatpush1.msra.mxu0 0.0
    %342 = vmatprep.subr.mxu0 0.0
    %343 = vmatpush1.msra.mxu0 0.0
    %344 = vmatprep.subr.mxu0 0.0
    %345 = vmatpush1.msra.mxu0 0.0
    %346 = vmatprep.subr.mxu0 0.0
    %347 = vmatpush1.msra.mxu0 0.0
    %348 = vmatprep.subr.mxu0 0.0
    %349 = vmatpush1.msra.mxu0 0.0
    %350 = vmatprep.subr.mxu0 0.0
    %351 = vmatpush1.msra.mxu0 0.0
    %352 = vmatprep.subr.mxu0 0.0
    %353 = vmatpush1.msra.mxu0 0.0
    %354 = vmatprep.subr.mxu0 0.0
    %355 = vmatpush1.msra.mxu0 0.0
    %356 = vmatprep.subr.mxu0 0.0
    %357 = vmatpush1.msra.mxu0 0.0
    %358 = vmatprep.subr.mxu0 0.0
    %359 = vmatpush1.msra.mxu0 0.0
    %360 = vmatprep.subr.mxu0 0.0
    %361 = vmatpush1.msra.mxu0 0.0
    %362 = vmatprep.subr.mxu0 0.0
    %363 = vmatpush1.msra.mxu0 0.0
    %364 = vmatprep.subr.mxu0 0.0
    %365 = vmatpush1.msra.mxu0 0.0
    %366 = vmatprep.subr.mxu0 0.0
    %367 = vmatpush1.msra.mxu0 0.0
    %368 = vmatprep.subr.mxu0 0.0
    %369 = vmatpush1.msra.mxu0 0.0
    %370 = vmatprep.subr.mxu0 0.0
    %371 = vmatpush1.msra.mxu0 0.0
    %372 = vmatprep.subr.mxu0 0.0
    %373 = vmatpush1.msra.mxu0 0.0
    %374 = vmatprep.subr.mxu0 0.0
    %375 = vmatpush1.msra.mxu0 0.0
    %376 = vmatprep.subr.mxu0 0.0
    %377 = vmatpush1.msra.mxu0 0.0
    %378 = vmatprep.subr.mxu0 0.0
    %379 = vmatpush1.msra.mxu0 0.0
    %380 = vmatprep.subr.mxu0 0.0
    %381 = vmatpush1.msra.mxu0 0.0
    %382 = vmatprep.subr.mxu0 0.0
    %383 = vmatpush1.msra.mxu0 0.0
    %384 = vmatprep.subr.mxu0 0.0
    %385 = vmatpush1.msra.mxu0 0.0
    %386 = vmatprep.mubr.f32.mxu0 0.0
    %387 = vmatmul.mubr.f32.gmra.mrb[0].mxu0 %v133
    %v388 = vpop.f32.mrb[0].mxu0
    %v389 = vadd.f32 0.0, %v388
    %v390 = vpop.f32.mrb[0].mxu0
    %391 = vmatprep.mubr.f32.mxu0 0.0
    %392 = vmatmul.mubr.f32.gmra.mrb[0].mxu0 %v136
    %v393 = vpop.f32.mrb[0].mxu0
    %v394 = vadd.f32 0.0, %v393
    %v395 = vpop.f32.mrb[0].mxu0
    %396 = vmatprep.mubr.f32.mxu0 0.0
    %397 = vmatmul.mubr.f32.gmra.mrb[0].mxu0 %v139
    %v398 = vpop.f32.mrb[0].mxu0
    %v399 = vadd.f32 0.0, %v398
    %v400 = vpop.f32.mrb[0].mxu0
    %401 = vmatprep.mubr.f32.mxu0 0.0
    %402 = vmatmul.mubr.f32.gmra.mrb[0].mxu0 %v142
    %v403 = vpop.f32.mrb[0].mxu0
    %v404 = vadd.f32 0.0, %v403
    %v405 = vpop.f32.mrb[0].mxu0
    %406 = vdwg.mxu0
    %v407 = vld [vmem:[%s4 + $0x60] sm:$0xff]
    %v408 = vld [vmem:[%s4 + $0x68] sm:$0xff]
    %v409 = vld [vmem:[%s4 + $0x70] sm:$0xff]
    %v410 = vld [vmem:[%s4 + $0x78] sm:$0xff]
    %411 = vmatprep.subr.mxu0 0.0
    %412 = vmatpush1.msra.mxu0 %v407
    %413 = vmatprep.subr.mxu0 0.0
    %414 = vmatpush1.msra.mxu0 %v408
    %415 = vmatprep.subr.mxu0 0.0
    %416 = vmatpush1.msra.mxu0 %v409
    %417 = vmatprep.subr.mxu0 0.0
    %418 = vmatpush1.msra.mxu0 %v410
    %419 = vmatprep.subr.mxu0 0.0
    %420 = vmatpush1.msra.mxu0 0.0
    %421 = vmatprep.subr.mxu0 0.0
    %422 = vmatpush1.msra.mxu0 0.0
    %423 = vmatprep.subr.mxu0 0.0
    %424 = vmatpush1.msra.mxu0 0.0
    %425 = vmatprep.subr.mxu0 0.0
    %426 = vmatpush1.msra.mxu0 0.0
    %427 = vmatprep.subr.mxu0 0.0
    %428 = vmatpush1.msra.mxu0 0.0
    %429 = vmatprep.subr.mxu0 0.0
    %430 = vmatpush1.msra.mxu0 0.0
    %431 = vmatprep.subr.mxu0 0.0
    %432 = vmatpush1.msra.mxu0 0.0
    %433 = vmatprep.subr.mxu0 0.0
    %434 = vmatpush1.msra.mxu0 0.0
    %435 = vmatprep.subr.mxu0 0.0
    %436 = vmatpush1.msra.mxu0 0.0
    %437 = vmatprep.subr.mxu0 0.0
    %438 = vmatpush1.msra.mxu0 0.0
    %439 = vmatprep.subr.mxu0 0.0
    %440 = vmatpush1.msra.mxu0 0.0
    %441 = vmatprep.subr.mxu0 0.0
    %442 = vmatpush1.msra.mxu0 0.0
    %443 = vmatprep.subr.mxu0 0.0
    %444 = vmatpush1.msra.mxu0 0.0
    %445 = vmatprep.subr.mxu0 0.0
    %446 = vmatpush1.msra.mxu0 0.0
    %447 = vmatprep.subr.mxu0 0.0
    %448 = vmatpush1.msra.mxu0 0.0
    %449 = vmatprep.subr.mxu0 0.0
    %450 = vmatpush1.msra.mxu0 0.0
    %451 = vmatprep.subr.mxu0 0.0
    %452 = vmatpush1.msra.mxu0 0.0
    %453 = vmatprep.subr.mxu0 0.0
    %454 = vmatpush1.msra.mxu0 0.0
    %455 = vmatprep.subr.mxu0 0.0
    %456 = vmatpush1.msra.mxu0 0.0
    %457 = vmatprep.subr.mxu0 0.0
    %458 = vmatpush1.msra.mxu0 0.0
    %459 = vmatprep.subr.mxu0 0.0
    %460 = vmatpush1.msra.mxu0 0.0
    %461 = vmatprep.subr.mxu0 0.0
    %462 = vmatpush1.msra.mxu0 0.0
    %463 = vmatprep.subr.mxu0 0.0
    %464 = vmatpush1.msra.mxu0 0.0
    %465 = vmatprep.subr.mxu0 0.0
    %466 = vmatpush1.msra.mxu0 0.0
    %467 = vmatprep.subr.mxu0 0.0
    %468 = vmatpush1.msra.mxu0 0.0
    %469 = vmatprep.subr.mxu0 0.0
    %470 = vmatpush1.msra.mxu0 0.0
    %471 = vmatprep.subr.mxu0 0.0
    %472 = vmatpush1.msra.mxu0 0.0
    %473 = vmatprep.subr.mxu0 0.0
    %474 = vmatpush1.msra.mxu0 0.0
    %475 = vmatprep.mubr.f32.mxu0 0.0
    %476 = vmatmul.mubr.f32.gmra.mrb[0].mxu0 %v133
    %v477 = vpop.f32.mrb[0].mxu0
    %v478 = vadd.f32 0.0, %v477
    %v479 = vpop.f32.mrb[0].mxu0
    %480 = vmatprep.mubr.f32.mxu0 0.0
    %481 = vmatmul.mubr.f32.gmra.mrb[0].mxu0 %v136
    %v482 = vpop.f32.mrb[0].mxu0
    %v483 = vadd.f32 0.0, %v482
    %v484 = vpop.f32.mrb[0].mxu0
    %485 = vmatprep.mubr.f32.mxu0 0.0
    %486 = vmatmul.mubr.f32.gmra.mrb[0].mxu0 %v139
    %v487 = vpop.f32.mrb[0].mxu0
    %v488 = vadd.f32 0.0, %v487
    %v489 = vpop.f32.mrb[0].mxu0
    %490 = vmatprep.mubr.f32.mxu0 0.0
    %491 = vmatmul.mubr.f32.gmra.mrb[0].mxu0 %v142
    %v492 = vpop.f32.mrb[0].mxu0
    %v493 = vadd.f32 0.0, %v492
    %v494 = vpop.f32.mrb[0].mxu0
    %495 = vdwg.mxu0
    %v496 = vld [vmem:[#allocation5] sm:$0xff]
    %v497 = vld [vmem:[#allocation5 + $0x8] sm:$0xff]
    %v498 = vld [vmem:[#allocation5 + $0x10] sm:$0xff]
    %v499 = vld [vmem:[#allocation5 + $0x18] sm:$0xff]
    %500 = vmatprep.subr.mxu0 0.0
    %501 = vmatpush1.msra.mxu0 %v496
    %502 = vmatprep.subr.mxu0 0.0
    %503 = vmatpush1.msra.mxu0 %v497
    %504 = vmatprep.subr.mxu0 0.0
    %505 = vmatpush1.msra.mxu0 %v498
    %506 = vmatprep.subr.mxu0 0.0
    %507 = vmatpush1.msra.mxu0 %v499
    %508 = vmatprep.subr.mxu0 0.0
    %509 = vmatpush1.msra.mxu0 0.0
    %510 = vmatprep.subr.mxu0 0.0
    %511 = vmatpush1.msra.mxu0 0.0
    %512 = vmatprep.subr.mxu0 0.0
    %513 = vmatpush1.msra.mxu0 0.0
    %514 = vmatprep.subr.mxu0 0.0
    %515 = vmatpush1.msra.mxu0 0.0
    %516 = vmatprep.subr.mxu0 0.0
    %517 = vmatpush1.msra.mxu0 0.0
    %518 = vmatprep.subr.mxu0 0.0
    %519 = vmatpush1.msra.mxu0 0.0
    %520 = vmatprep.subr.mxu0 0.0
    %521 = vmatpush1.msra.mxu0 0.0
    %522 = vmatprep.subr.mxu0 0.0
    %523 = vmatpush1.msra.mxu0 0.0
    %524 = vmatprep.subr.mxu0 0.0
    %525 = vmatpush1.msra.mxu0 0.0
    %526 = vmatprep.subr.mxu0 0.0
    %527 = vmatpush1.msra.mxu0 0.0
    %528 = vmatprep.subr.mxu0 0.0
    %529 = vmatpush1.msra.mxu0 0.0
    %530 = vmatprep.subr.mxu0 0.0
    %531 = vmatpush1.msra.mxu0 0.0
    %532 = vmatprep.subr.mxu0 0.0
    %533 = vmatpush1.msra.mxu0 0.0
    %534 = vmatprep.subr.mxu0 0.0
    %535 = vmatpush1.msra.mxu0 0.0
    %536 = vmatprep.subr.mxu0 0.0
    %537 = vmatpush1.msra.mxu0 0.0
    %538 = vmatprep.subr.mxu0 0.0
    %539 = vmatpush1.msra.mxu0 0.0
    %540 = vmatprep.subr.mxu0 0.0
    %541 = vmatpush1.msra.mxu0 0.0
    %542 = vmatprep.subr.mxu0 0.0
    %543 = vmatpush1.msra.mxu0 0.0
    %544 = vmatprep.subr.mxu0 0.0
    %545 = vmatpush1.msra.mxu0 0.0
    %546 = vmatprep.subr.mxu0 0.0
    %547 = vmatpush1.msra.mxu0 0.0
    %548 = vmatprep.subr.mxu0 0.0
    %549 = vmatpush1.msra.mxu0 0.0
    %550 = vmatprep.subr.mxu0 0.0
    %551 = vmatpush1.msra.mxu0 0.0
    %552 = vmatprep.subr.mxu0 0.0
    %553 = vmatpush1.msra.mxu0 0.0
    %554 = vmatprep.subr.mxu0 0.0
    %555 = vmatpush1.msra.mxu0 0.0
    %556 = vmatprep.subr.mxu0 0.0
    %557 = vmatpush1.msra.mxu0 0.0
    %558 = vmatprep.subr.mxu0 0.0
    %559 = vmatpush1.msra.mxu0 0.0
    %560 = vmatprep.subr.mxu0 0.0
    %561 = vmatpush1.msra.mxu0 0.0
    %562 = vmatprep.subr.mxu0 0.0
    %563 = vmatpush1.msra.mxu0 0.0
    %564 = vmatprep.mubr.f32.mxu0 0.0
    %565 = vmatmul.mubr.f32.gmra.mrb[0].mxu0 %v133
    %v566 = vpop.f32.mrb[0].mxu0
    %v567 = vadd.f32 0.0, %v566
    %v568 = vpop.f32.mrb[0].mxu0
    %569 = vmatprep.mubr.f32.mxu0 0.0
    %570 = vmatmul.mubr.f32.gmra.mrb[0].mxu0 %v136
    %v571 = vpop.f32.mrb[0].mxu0
    %v572 = vadd.f32 0.0, %v571
    %v573 = vpop.f32.mrb[0].mxu0
    %574 = vmatprep.mubr.f32.mxu0 0.0
    %575 = vmatmul.mubr.f32.gmra.mrb[0].mxu0 %v139
    %v576 = vpop.f32.mrb[0].mxu0
    %v577 = vadd.f32 0.0, %v576
    %v578 = vpop.f32.mrb[0].mxu0
    %579 = vmatprep.mubr.f32.mxu0 0.0
    %580 = vmatmul.mubr.f32.gmra.mrb[0].mxu0 %v142
    %v581 = vpop.f32.mrb[0].mxu0
    %v582 = vadd.f32 0.0, %v581
    %v583 = vpop.f32.mrb[0].mxu0
    %584 = vdwg.mxu0
    %v585 = vld [vmem:[#allocation7] sm:$0xff]
    %v586 = vld [vmem:[#allocation7 + $0x8] sm:$0xff]
    %v587 = vld [vmem:[#allocation7 + $0x10] sm:$0xff]
    %v588 = vld [vmem:[#allocation7 + $0x18] sm:$0xff]
    %v589 = vld [vmem:[%s1] sm:$0xff]
    %v590 = vld [vmem:[%s1 + $0x8] sm:$0xff]
    %v591 = vld [vmem:[%s1 + $0x10] sm:$0xff]
    %v592 = vld [vmem:[%s1 + $0x18] sm:$0xff]
    %v594 = vsel %vm131, %v585, 0
    %v597 = vsel %vm131, %v586, 0
    %v600 = vsel %vm131, %v587, 0
    %v603 = vsel %vm131, %v588, 0
    %605 = vmatprep.subr.mxu0 0.0
    %606 = vmatpush1.msra.mxu0 %v589
    %607 = vmatprep.subr.mxu0 0.0
    %608 = vmatpush1.msra.mxu0 %v590
    %609 = vmatprep.subr.mxu0 0.0
    %610 = vmatpush1.msra.mxu0 %v591
    %611 = vmatprep.subr.mxu0 0.0
    %612 = vmatpush1.msra.mxu0 %v592
    %613 = vmatprep.subr.mxu0 0.0
    %614 = vmatpush1.msra.mxu0 0.0
    %615 = vmatprep.subr.mxu0 0.0
    %616 = vmatpush1.msra.mxu0 0.0
    %617 = vmatprep.subr.mxu0 0.0
    %618 = vmatpush1.msra.mxu0 0.0
    %619 = vmatprep.subr.mxu0 0.0
    %620 = vmatpush1.msra.mxu0 0.0
    %621 = vmatprep.subr.mxu0 0.0
    %622 = vmatpush1.msra.mxu0 0.0
    %623 = vmatprep.subr.mxu0 0.0
    %624 = vmatpush1.msra.mxu0 0.0
    %625 = vmatprep.subr.mxu0 0.0
    %626 = vmatpush1.msra.mxu0 0.0
    %627 = vmatprep.subr.mxu0 0.0
    %628 = vmatpush1.msra.mxu0 0.0
    %629 = vmatprep.subr.mxu0 0.0
    %630 = vmatpush1.msra.mxu0 0.0
    %631 = vmatprep.subr.mxu0 0.0
    %632 = vmatpush1.msra.mxu0 0.0
    %633 = vmatprep.subr.mxu0 0.0
    %634 = vmatpush1.msra.mxu0 0.0
    %635 = vmatprep.subr.mxu0 0.0
    %636 = vmatpush1.msra.mxu0 0.0
    %637 = vmatprep.subr.mxu0 0.0
    %638 = vmatpush1.msra.mxu0 0.0
    %639 = vmatprep.subr.mxu0 0.0
    %640 = vmatpush1.msra.mxu0 0.0
    %641 = vmatprep.subr.mxu0 0.0
    %642 = vmatpush1.msra.mxu0 0.0
    %643 = vmatprep.subr.mxu0 0.0
    %644 = vmatpush1.msra.mxu0 0.0
    %645 = vmatprep.subr.mxu0 0.0
    %646 = vmatpush1.msra.mxu0 0.0
    %647 = vmatprep.subr.mxu0 0.0
    %648 = vmatpush1.msra.mxu0 0.0
    %649 = vmatprep.subr.mxu0 0.0
    %650 = vmatpush1.msra.mxu0 0.0
    %651 = vmatprep.subr.mxu0 0.0
    %652 = vmatpush1.msra.mxu0 0.0
    %653 = vmatprep.subr.mxu0 0.0
    %654 = vmatpush1.msra.mxu0 0.0
    %655 = vmatprep.subr.mxu0 0.0
    %656 = vmatpush1.msra.mxu0 0.0
    %657 = vmatprep.subr.mxu0 0.0
    %658 = vmatpush1.msra.mxu0 0.0
    %659 = vmatprep.subr.mxu0 0.0
    %660 = vmatpush1.msra.mxu0 0.0
    %661 = vmatprep.subr.mxu0 0.0
    %662 = vmatpush1.msra.mxu0 0.0
    %663 = vmatprep.subr.mxu0 0.0
    %664 = vmatpush1.msra.mxu0 0.0
    %665 = vmatprep.subr.mxu0 0.0
    %666 = vmatpush1.msra.mxu0 0.0
    %667 = vmatprep.subr.mxu0 0.0
    %668 = vmatpush1.msra.mxu0 0.0
    %669 = vmatprep.mubr.f32.mxu0 0.0
    %670 = vmatmul.mubr.f32.gmra.mrb[0].mxu0 %v594
    %v671 = vpop.f32.mrb[0].mxu0
    %v672 = vadd.f32 0.0, %v671
    %v673 = vpop.f32.mrb[0].mxu0
    %674 = vmatprep.mubr.f32.mxu0 0.0
    %675 = vmatmul.mubr.f32.gmra.mrb[0].mxu0 %v597
    %v676 = vpop.f32.mrb[0].mxu0
    %v677 = vadd.f32 0.0, %v676
    %v678 = vpop.f32.mrb[0].mxu0
    %679 = vmatprep.mubr.f32.mxu0 0.0
    %680 = vmatmul.mubr.f32.gmra.mrb[0].mxu0 %v600
    %v681 = vpop.f32.mrb[0].mxu0
    %v682 = vadd.f32 0.0, %v681
    %v683 = vpop.f32.mrb[0].mxu0
    %684 = vmatprep.mubr.f32.mxu0 0.0
    %685 = vmatmul.mubr.f32.gmra.mrb[0].mxu0 %v603
    %v686 = vpop.f32.mrb[0].mxu0
    %v687 = vadd.f32 0.0, %v686
    %v688 = vpop.f32.mrb[0].mxu0
    %689 = vdwg.mxu0
    %v690 = vld [vmem:[#allocation11] sm:$0xff]
    %v691 = vld [vmem:[#allocation11 + $0x8] sm:$0xff]
    %v692 = vld [vmem:[#allocation11 + $0x10] sm:$0xff]
    %v693 = vld [vmem:[#allocation11 + $0x18] sm:$0xff]
    %v694 = vmul.f32 %v672, %v690
    %v695 = vmul.f32 %v677, %v691
    %v696 = vmul.f32 %v682, %v692
    %v697 = vmul.f32 %v687, %v693
    %v698 = vld [vmem:[%s9] sm:$0xff]
    %v699 = vld [vmem:[%s9 + $0x8] sm:$0xff]
    %v700 = vld [vmem:[%s9 + $0x10] sm:$0xff]
    %v701 = vld [vmem:[%s9 + $0x18] sm:$0xff]
    %v703 = vsel %vm131, %v567, 0
    %v706 = vsel %vm131, %v572, 0
    %v709 = vsel %vm131, %v577, 0
    %v712 = vsel %vm131, %v582, 0
    %714 = vmatprep.subr.mxu0 0.0
    %715 = vmatpush1.msra.mxu0 %v694
    %716 = vmatprep.subr.mxu0 0.0
    %717 = vmatpush1.msra.mxu0 %v695
    %718 = vmatprep.subr.mxu0 0.0
    %719 = vmatpush1.msra.mxu0 %v696
    %720 = vmatprep.subr.mxu0 0.0
    %721 = vmatpush1.msra.mxu0 %v697
    %722 = vmatprep.subr.mxu0 0.0
    %723 = vmatpush1.msra.mxu0 0.0
    %724 = vmatprep.subr.mxu0 0.0
    %725 = vmatpush1.msra.mxu0 0.0
    %726 = vmatprep.subr.mxu0 0.0
    %727 = vmatpush1.msra.mxu0 0.0
    %728 = vmatprep.subr.mxu0 0.0
    %729 = vmatpush1.msra.mxu0 0.0
    %730 = vmatprep.subr.mxu0 0.0
    %731 = vmatpush1.msra.mxu0 0.0
    %732 = vmatprep.subr.mxu0 0.0
    %733 = vmatpush1.msra.mxu0 0.0
    %734 = vmatprep.subr.mxu0 0.0
    %735 = vmatpush1.msra.mxu0 0.0
    %736 = vmatprep.subr.mxu0 0.0
    %737 = vmatpush1.msra.mxu0 0.0
    %738 = vmatprep.subr.mxu0 0.0
    %739 = vmatpush1.msra.mxu0 0.0
    %740 = vmatprep.subr.mxu0 0.0
    %741 = vmatpush1.msra.mxu0 0.0
    %742 = vmatprep.subr.mxu0 0.0
    %743 = vmatpush1.msra.mxu0 0.0
    %744 = vmatprep.subr.mxu0 0.0
    %745 = vmatpush1.msra.mxu0 0.0
    %746 = vmatprep.subr.mxu0 0.0
    %747 = vmatpush1.msra.mxu0 0.0
    %748 = vmatprep.subr.mxu0 0.0
    %749 = vmatpush1.msra.mxu0 0.0
    %750 = vmatprep.subr.mxu0 0.0
    %751 = vmatpush1.msra.mxu0 0.0
    %752 = vmatprep.subr.mxu0 0.0
    %753 = vmatpush1.msra.mxu0 0.0
    %754 = vmatprep.subr.mxu0 0.0
    %755 = vmatpush1.msra.mxu0 0.0
    %756 = vmatprep.subr.mxu0 0.0
    %757 = vmatpush1.msra.mxu0 0.0
    %758 = vmatprep.subr.mxu0 0.0
    %759 = vmatpush1.msra.mxu0 0.0
    %760 = vmatprep.subr.mxu0 0.0
    %761 = vmatpush1.msra.mxu0 0.0
    %762 = vmatprep.subr.mxu0 0.0
    %763 = vmatpush1.msra.mxu0 0.0
    %764 = vmatprep.subr.mxu0 0.0
    %765 = vmatpush1.msra.mxu0 0.0
    %766 = vmatprep.subr.mxu0 0.0
    %767 = vmatpush1.msra.mxu0 0.0
    %768 = vmatprep.subr.mxu0 0.0
    %769 = vmatpush1.msra.mxu0 0.0
    %770 = vmatprep.subr.mxu0 0.0
    %771 = vmatpush1.msra.mxu0 0.0
    %772 = vmatprep.subr.mxu0 0.0
    %773 = vmatpush1.msra.mxu0 0.0
    %774 = vmatprep.subr.mxu0 0.0
    %775 = vmatpush1.msra.mxu0 0.0
    %776 = vmatprep.subr.mxu0 0.0
    %777 = vmatpush1.msra.mxu0 0.0
    %778 = vmatprep.mubr.f32.mxu0 0.0
    %779 = vmatmul.mubr.f32.gmra.mrb[0].mxu0 %v703
    %v780 = vpop.f32.mrb[0].mxu0
    %v781 = vadd.f32 %v698, %v780
    %v782 = vpop.f32.mrb[0].mxu0
    %783 = vmatprep.mubr.f32.mxu0 0.0
    %784 = vmatmul.mubr.f32.gmra.mrb[0].mxu0 %v706
    %v785 = vpop.f32.mrb[0].mxu0
    %v786 = vadd.f32 %v699, %v785
    %v787 = vpop.f32.mrb[0].mxu0
    %788 = vmatprep.mubr.f32.mxu0 0.0
    %789 = vmatmul.mubr.f32.gmra.mrb[0].mxu0 %v709
    %v790 = vpop.f32.mrb[0].mxu0
    %v791 = vadd.f32 %v700, %v790
    %v792 = vpop.f32.mrb[0].mxu0
    %793 = vmatprep.mubr.f32.mxu0 0.0
    %794 = vmatmul.mubr.f32.gmra.mrb[0].mxu0 %v712
    %v795 = vpop.f32.mrb[0].mxu0
    %v796 = vadd.f32 %v701, %v795
    %v797 = vpop.f32.mrb[0].mxu0
    %798 = vdwg.mxu0
    %799 = vmax.xlane.f32.xlu0 %v781
    %v800 = vpop.xlane.xlu0 %799
    %801 = vmax.xlane.f32.xlu0 %v786
    %v802 = vpop.xlane.xlu0 %801
    %803 = vmax.xlane.f32.xlu0 %v791
    %v804 = vpop.xlane.xlu0 %803
    %805 = vmax.xlane.f32.xlu0 %v796
    %v806 = vpop.xlane.xlu0 %805
    %v807 = vsub.f32 %v781, %v800
    %v808 = vsub.f32 %v786, %v802
    %v809 = vsub.f32 %v791, %v804
    %v810 = vsub.f32 %v796, %v806
    %v811 = vmul.f32 %v807, 1.442695
    %v812 = vpow.pop %v811
    %v813 = vmul.f32 %v808, 1.442695
    %v814 = vpow.pop %v813
    %v815 = vmul.f32 %v809, 1.442695
    %v816 = vpow.pop %v815
    %v817 = vmul.f32 %v810, 1.442695
    %v818 = vpow.pop %v817
    %v819 = vld [vmem:[%s10] sm:$0xff]
    %v820 = vld [vmem:[%s10 + $0x8] sm:$0xff]
    %v821 = vld [vmem:[%s10 + $0x10] sm:$0xff]
    %v822 = vld [vmem:[%s10 + $0x18] sm:$0xff]
    %v823 = vld [vmem:[%s10 + $0x20] sm:$0xff]
    %v824 = vld [vmem:[%s10 + $0x28] sm:$0xff]
    %v825 = vld [vmem:[%s10 + $0x30] sm:$0xff]
    %v826 = vld [vmem:[%s10 + $0x38] sm:$0xff]
    %v827 = vld [vmem:[%s10 + $0x40] sm:$0xff]
    %v828 = vld [vmem:[%s10 + $0x48] sm:$0xff]
    %v829 = vld [vmem:[%s10 + $0x50] sm:$0xff]
    %v830 = vld [vmem:[%s10 + $0x58] sm:$0xff]
    %v831 = vld [vmem:[%s10 + $0x60] sm:$0xff]
    %v832 = vld [vmem:[%s10 + $0x68] sm:$0xff]
    %v833 = vld [vmem:[%s10 + $0x70] sm:$0xff]
    %v834 = vld [vmem:[%s10 + $0x78] sm:$0xff]
    %835 = vmatprep.subr.mxu0 0.0
    %836 = vmatpush1.msra.mxu0 %v819
    %837 = vmatprep.subr.mxu0 0.0
    %838 = vmatpush1.msra.mxu0 %v820
    %839 = vmatprep.subr.mxu0 0.0
    %840 = vmatpush1.msra.mxu0 %v821
    %841 = vmatprep.subr.mxu0 0.0
    %842 = vmatpush1.msra.mxu0 %v822
    %843 = vmatprep.subr.mxu0 0.0
    %844 = vmatpush1.msra.mxu0 %v823
    %845 = vmatprep.subr.mxu0 0.0
    %846 = vmatpush1.msra.mxu0 %v824
    %847 = vmatprep.subr.mxu0 0.0
    %848 = vmatpush1.msra.mxu0 %v825
    %849 = vmatprep.subr.mxu0 0.0
    %850 = vmatpush1.msra.mxu0 %v826
    %851 = vmatprep.subr.mxu0 0.0
    %852 = vmatpush1.msra.mxu0 %v827
    %853 = vmatprep.subr.mxu0 0.0
    %854 = vmatpush1.msra.mxu0 %v828
    %855 = vmatprep.subr.mxu0 0.0
    %856 = vmatpush1.msra.mxu0 %v829
    %857 = vmatprep.subr.mxu0 0.0
    %858 = vmatpush1.msra.mxu0 %v830
    %859 = vmatprep.subr.mxu0 0.0
    %860 = vmatpush1.msra.mxu0 %v831
    %861 = vmatprep.subr.mxu0 0.0
    %862 = vmatpush1.msra.mxu0 %v832
    %863 = vmatprep.subr.mxu0 0.0
    %864 = vmatpush1.msra.mxu0 %v833
    %865 = vmatprep.subr.mxu0 0.0
    %866 = vmatpush1.msra.mxu0 %v834
    %867 = vmatprep.subr.mxu0 0.0
    %868 = vmatpush1.msra.mxu0 0.0
    %869 = vmatprep.subr.mxu0 0.0
    %870 = vmatpush1.msra.mxu0 0.0
    %871 = vmatprep.subr.mxu0 0.0
    %872 = vmatpush1.msra.mxu0 0.0
    %873 = vmatprep.subr.mxu0 0.0
    %874 = vmatpush1.msra.mxu0 0.0
    %875 = vmatprep.subr.mxu0 0.0
    %876 = vmatpush1.msra.mxu0 0.0
    %877 = vmatprep.subr.mxu0 0.0
    %878 = vmatpush1.msra.mxu0 0.0
    %879 = vmatprep.subr.mxu0 0.0
    %880 = vmatpush1.msra.mxu0 0.0
    %881 = vmatprep.subr.mxu0 0.0
    %882 = vmatpush1.msra.mxu0 0.0
    %883 = vmatprep.subr.mxu0 0.0
    %884 = vmatpush1.msra.mxu0 0.0
    %885 = vmatprep.subr.mxu0 0.0
    %886 = vmatpush1.msra.mxu0 0.0
    %887 = vmatprep.subr.mxu0 0.0
    %888 = vmatpush1.msra.mxu0 0.0
    %889 = vmatprep.subr.mxu0 0.0
    %890 = vmatpush1.msra.mxu0 0.0
    %891 = vmatprep.subr.mxu0 0.0
    %892 = vmatpush1.msra.mxu0 0.0
    %893 = vmatprep.subr.mxu0 0.0
    %894 = vmatpush1.msra.mxu0 0.0
    %895 = vmatprep.subr.mxu0 0.0
    %896 = vmatpush1.msra.mxu0 0.0
    %897 = vmatprep.subr.mxu0 0.0
    %898 = vmatpush1.msra.mxu0 0.0
    %899 = vmatprep.mubr.f32.mxu0 0.0
    %900 = vmatmul.mubr.f32.gmra.mrb[0].mxu0 %v812
    %v901 = vpop.f32.mrb[0].mxu0
    %v902 = vadd.f32 0.0, %v901
    %v903 = vpop.f32.mrb[0].mxu0
    %904 = vmatprep.mubr.f32.mxu0 0.0
    %905 = vmatmul.mubr.f32.gmra.mrb[0].mxu0 %v814
    %v906 = vpop.f32.mrb[0].mxu0
    %v907 = vadd.f32 0.0, %v906
    %v908 = vpop.f32.mrb[0].mxu0
    %909 = vmatprep.mubr.f32.mxu0 0.0
    %910 = vmatmul.mubr.f32.gmra.mrb[0].mxu0 %v816
    %v911 = vpop.f32.mrb[0].mxu0
    %v912 = vadd.f32 0.0, %v911
    %v913 = vpop.f32.mrb[0].mxu0
    %914 = vmatprep.mubr.f32.mxu0 0.0
    %915 = vmatmul.mubr.f32.gmra.mrb[0].mxu0 %v818
    %v916 = vpop.f32.mrb[0].mxu0
    %v917 = vadd.f32 0.0, %v916
    %v918 = vpop.f32.mrb[0].mxu0
    %919 = vdwg.mxu0
    %v920 = vrcp.pop %v902
    %v921 = vrcp.pop %v907
    %v922 = vrcp.pop %v912
    %v923 = vrcp.pop %v917
    %v924 = vmul.f32 %v902, %v920
    %v925 = vmul.f32 %v907, %v921
    %v926 = vmul.f32 %v912, %v922
    %v927 = vmul.f32 %v917, %v923
    %v928 = vsub.f32 2.0, %v924
    %v929 = vsub.f32 2.0, %v925
    %v930 = vsub.f32 2.0, %v926
    %v931 = vsub.f32 2.0, %v927
    %v932 = vmul.f32 %v920, %v928
    %v933 = vmul.f32 %v921, %v929
    %v934 = vmul.f32 %v922, %v930
    %v935 = vmul.f32 %v923, %v931
    %v936 = vmul.f32 %v812, %v932
    %v937 = vmul.f32 %v814, %v933
    %v938 = vmul.f32 %v816, %v934
    %v939 = vmul.f32 %v818, %v935
    %940 = vst [vmem:[%s12] sm:$0xff] %v936
    %941 = vst [vmem:[%s12 + $0x8] sm:$0xff] %v937
    %942 = vst [vmem:[%s12 + $0x10] sm:$0xff] %v938
    %943 = vst [vmem:[%s12 + $0x18] sm:$0xff] %v939
    %944 = vmatprep.subr.mxu0 0.0
    %945 = vmatpush1.msra.mxu0 %v211
    %946 = vmatprep.subr.mxu0 0.0
    %947 = vmatpush1.msra.mxu0 %v216
    %948 = vmatprep.subr.mxu0 0.0
    %949 = vmatpush1.msra.mxu0 %v221
    %950 = vmatprep.subr.mxu0 0.0
    %951 = vmatpush1.msra.mxu0 %v226
    %952 = vmatprep.subr.mxu0 0.0
    %953 = vmatpush1.msra.mxu0 %v300
    %954 = vmatprep.subr.mxu0 0.0
    %955 = vmatpush1.msra.mxu0 %v305
    %956 = vmatprep.subr.mxu0 0.0
    %957 = vmatpush1.msra.mxu0 %v310
    %958 = vmatprep.subr.mxu0 0.0
    %959 = vmatpush1.msra.mxu0 %v315
    %960 = vmatprep.subr.mxu0 0.0
    %961 = vmatpush1.msra.mxu0 %v389
    %962 = vmatprep.subr.mxu0 0.0
    %963 = vmatpush1.msra.mxu0 %v394
    %964 = vmatprep.subr.mxu0 0.0
    %965 = vmatpush1.msra.mxu0 %v399
    %966 = vmatprep.subr.mxu0 0.0
    %967 = vmatpush1.msra.mxu0 %v404
    %968 = vmatprep.subr.mxu0 0.0
    %969 = vmatpush1.msra.mxu0 %v478
    %970 = vmatprep.subr.mxu0 0.0
    %971 = vmatpush1.msra.mxu0 %v483
    %972 = vmatprep.subr.mxu0 0.0
    %973 = vmatpush1.msra.mxu0 %v488
    %974 = vmatprep.subr.mxu0 0.0
    %975 = vmatpush1.msra.mxu0 %v493
    %976 = vmatprep.subr.mxu0 0.0
    %977 = vmatpush1.msra.mxu0 0.0
    %978 = vmatprep.subr.mxu0 0.0
    %979 = vmatpush1.msra.mxu0 0.0
    %980 = vmatprep.subr.mxu0 0.0
    %981 = vmatpush1.msra.mxu0 0.0
    %982 = vmatprep.subr.mxu0 0.0
    %983 = vmatpush1.msra.mxu0 0.0
    %984 = vmatprep.subr.mxu0 0.0
    %985 = vmatpush1.msra.mxu0 0.0
    %986 = vmatprep.subr.mxu0 0.0
    %987 = vmatpush1.msra.mxu0 0.0
    %988 = vmatprep.subr.mxu0 0.0
    %989 = vmatpush1.msra.mxu0 0.0
    %990 = vmatprep.subr.mxu0 0.0
    %991 = vmatpush1.msra.mxu0 0.0
    %992 = vmatprep.subr.mxu0 0.0
    %993 = vmatpush1.msra.mxu0 0.0
    %994 = vmatprep.subr.mxu0 0.0
    %995 = vmatpush1.msra.mxu0 0.0
    %996 = vmatprep.subr.mxu0 0.0
    %997 = vmatpush1.msra.mxu0 0.0
    %998 = vmatprep.subr.mxu0 0.0
    %999 = vmatpush1.msra.mxu0 0.0
    %1000 = vmatprep.subr.mxu0 0.0
    %1001 = vmatpush1.msra.mxu0 0.0
    %1002 = vmatprep.subr.mxu0 0.0
    %1003 = vmatpush1.msra.mxu0 0.0
    %1004 = vmatprep.subr.mxu0 0.0
    %1005 = vmatpush1.msra.mxu0 0.0
    %1006 = vmatprep.subr.mxu0 0.0
    %1007 = vmatpush1.msra.mxu0 0.0
    %1008 = vmatprep.mubr.f32.mxu0 0.0
    %1009 = vmatmul.mubr.f32.gmra.mrb[0].mxu0 %v936
    %v1010 = vpop.f32.mrb[0].mxu0
    %v1011 = vadd.f32 0.0, %v1010
    %v1012 = vpop.f32.mrb[0].mxu0
    %1013 = vmatprep.mubr.f32.mxu0 0.0
    %1014 = vmatmul.mubr.f32.gmra.mrb[0].mxu0 %v937
    %v1015 = vpop.f32.mrb[0].mxu0
    %v1016 = vadd.f32 0.0, %v1015
    %v1017 = vpop.f32.mrb[0].mxu0
    %1018 = vmatprep.mubr.f32.mxu0 0.0
    %1019 = vmatmul.mubr.f32.gmra.mrb[0].mxu0 %v938
    %v1020 = vpop.f32.mrb[0].mxu0
    %v1021 = vadd.f32 0.0, %v1020
    %v1022 = vpop.f32.mrb[0].mxu0
    %1023 = vmatprep.mubr.f32.mxu0 0.0
    %1024 = vmatmul.mubr.f32.gmra.mrb[0].mxu0 %v939
    %v1025 = vpop.f32.mrb[0].mxu0
    %v1026 = vadd.f32 0.0, %v1025
    %v1027 = vpop.f32.mrb[0].mxu0
    %1028 = vdwg.mxu0
    %v1029 = vadd.f32 %v123, %v1011
    %v1030 = vadd.f32 %v124, %v1016
    %v1031 = vadd.f32 %v125, %v1021
    %v1032 = vadd.f32 %v126, %v1026
    %v1033 = vld [vmem:[#allocation10] sm:$0xff]
    %v1034 = vld [vmem:[#allocation10 + $0x8] sm:$0xff]
    %v1035 = vld [vmem:[#allocation10 + $0x10] sm:$0xff]
    %v1036 = vld [vmem:[#allocation10 + $0x18] sm:$0xff]
    %v1038 = vsel %vm131, %v1033, 0
    %v1041 = vsel %vm131, %v1034, 0
    %v1044 = vsel %vm131, %v1035, 0
    %v1047 = vsel %vm131, %v1036, 0
    %1049 = vmatprep.subr.mxu0 0.0
    %1050 = vmatpush1.msra.mxu0 %v1029
    %1051 = vmatprep.subr.mxu0 0.0
    %1052 = vmatpush1.msra.mxu0 %v1030
    %1053 = vmatprep.subr.mxu0 0.0
    %1054 = vmatpush1.msra.mxu0 %v1031
    %1055 = vmatprep.subr.mxu0 0.0
    %1056 = vmatpush1.msra.mxu0 %v1032
    %1057 = vmatprep.subr.mxu0 0.0
    %1058 = vmatpush1.msra.mxu0 0.0
    %1059 = vmatprep.subr.mxu0 0.0
    %1060 = vmatpush1.msra.mxu0 0.0
    %1061 = vmatprep.subr.mxu0 0.0
    %1062 = vmatpush1.msra.mxu0 0.0
    %1063 = vmatprep.subr.mxu0 0.0
    %1064 = vmatpush1.msra.mxu0 0.0
    %1065 = vmatprep.subr.mxu0 0.0
    %1066 = vmatpush1.msra.mxu0 0.0
    %1067 = vmatprep.subr.mxu0 0.0
    %1068 = vmatpush1.msra.mxu0 0.0
    %1069 = vmatprep.subr.mxu0 0.0
    %1070 = vmatpush1.msra.mxu0 0.0
    %1071 = vmatprep.subr.mxu0 0.0
    %1072 = vmatpush1.msra.mxu0 0.0
    %1073 = vmatprep.subr.mxu0 0.0
    %1074 = vmatpush1.msra.mxu0 0.0
    %1075 = vmatprep.subr.mxu0 0.0
    %1076 = vmatpush1.msra.mxu0 0.0
    %1077 = vmatprep.subr.mxu0 0.0
    %1078 = vmatpush1.msra.mxu0 0.0
    %1079 = vmatprep.subr.mxu0 0.0
    %1080 = vmatpush1.msra.mxu0 0.0
    %1081 = vmatprep.subr.mxu0 0.0
    %1082 = vmatpush1.msra.mxu0 0.0
    %1083 = vmatprep.subr.mxu0 0.0
    %1084 = vmatpush1.msra.mxu0 0.0
    %1085 = vmatprep.subr.mxu0 0.0
    %1086 = vmatpush1.msra.mxu0 0.0
    %1087 = vmatprep.subr.mxu0 0.0
    %1088 = vmatpush1.msra.mxu0 0.0
    %1089 = vmatprep.subr.mxu0 0.0
    %1090 = vmatpush1.msra.mxu0 0.0
    %1091 = vmatprep.subr.mxu0 0.0
    %1092 = vmatpush1.msra.mxu0 0.0
    %1093 = vmatprep.subr.mxu0 0.0
    %1094 = vmatpush1.msra.mxu0 0.0
    %1095 = vmatprep.subr.mxu0 0.0
    %1096 = vmatpush1.msra.mxu0 0.0
    %1097 = vmatprep.subr.mxu0 0.0
    %1098 = vmatpush1.msra.mxu0 0.0
    %1099 = vmatprep.subr.mxu0 0.0
    %1100 = vmatpush1.msra.mxu0 0.0
    %1101 = vmatprep.subr.mxu0 0.0
    %1102 = vmatpush1.msra.mxu0 0.0
    %1103 = vmatprep.subr.mxu0 0.0
    %1104 = vmatpush1.msra.mxu0 0.0
    %1105 = vmatprep.subr.mxu0 0.0
    %1106 = vmatpush1.msra.mxu0 0.0
    %1107 = vmatprep.subr.mxu0 0.0
    %1108 = vmatpush1.msra.mxu0 0.0
    %1109 = vmatprep.subr.mxu0 0.0
    %1110 = vmatpush1.msra.mxu0 0.0
    %1111 = vmatprep.subr.mxu0 0.0
    %1112 = vmatpush1.msra.mxu0 0.0
    %1113 = vmatprep.mubr.f32.mxu0 0.0
    %1114 = vmatmul.mubr.f32.gmra.mrb[0].mxu0 %v1038
    %v1115 = vpop.f32.mrb[0].mxu0
    %v1116 = vadd.f32 0.0, %v1115
    %v1117 = vpop.f32.mrb[0].mxu0
    %1118 = vmatprep.mubr.f32.mxu0 0.0
    %1119 = vmatmul.mubr.f32.gmra.mrb[0].mxu0 %v1041
    %v1120 = vpop.f32.mrb[0].mxu0
    %v1121 = vadd.f32 0.0, %v1120
    %v1122 = vpop.f32.mrb[0].mxu0
    %1123 = vmatprep.mubr.f32.mxu0 0.0
    %1124 = vmatmul.mubr.f32.gmra.mrb[0].mxu0 %v1044
    %v1125 = vpop.f32.mrb[0].mxu0
    %v1126 = vadd.f32 0.0, %v1125
    %v1127 = vpop.f32.mrb[0].mxu0
    %1128 = vmatprep.mubr.f32.mxu0 0.0
    %1129 = vmatmul.mubr.f32.gmra.mrb[0].mxu0 %v1047
    %v1130 = vpop.f32.mrb[0].mxu0
    %v1131 = vadd.f32 0.0, %v1130
    %v1132 = vpop.f32.mrb[0].mxu0
    %1133 = vdwg.mxu0
    %v1134 = vld [vmem:[#allocation8] sm:$0xff]
    %v1135 = vld [vmem:[#allocation8 + $0x8] sm:$0xff]
    %v1136 = vld [vmem:[#allocation8 + $0x10] sm:$0xff]
    %v1137 = vld [vmem:[#allocation8 + $0x18] sm:$0xff]
    %v1139 = vsel %vm131, %v1116, 0
    %v1142 = vsel %vm131, %v1121, 0
    %v1145 = vsel %vm131, %v1126, 0
    %v1148 = vsel %vm131, %v1131, 0
    %1150 = vmatprep.subr.mxu0 0.0
    %1151 = vmatpush1.msra.mxu0 %v1134
    %1152 = vmatprep.subr.mxu0 0.0
    %1153 = vmatpush1.msra.mxu0 %v1135
    %1154 = vmatprep.subr.mxu0 0.0
    %1155 = vmatpush1.msra.mxu0 %v1136
    %1156 = vmatprep.subr.mxu0 0.0
    %1157 = vmatpush1.msra.mxu0 %v1137
    %1158 = vmatprep.subr.mxu0 0.0
    %1159 = vmatpush1.msra.mxu0 0.0
    %1160 = vmatprep.subr.mxu0 0.0
    %1161 = vmatpush1.msra.mxu0 0.0
    %1162 = vmatprep.subr.mxu0 0.0
    %1163 = vmatpush1.msra.mxu0 0.0
    %1164 = vmatprep.subr.mxu0 0.0
    %1165 = vmatpush1.msra.mxu0 0.0
    %1166 = vmatprep.subr.mxu0 0.0
    %1167 = vmatpush1.msra.mxu0 0.0
    %1168 = vmatprep.subr.mxu0 0.0
    %1169 = vmatpush1.msra.mxu0 0.0
    %1170 = vmatprep.subr.mxu0 0.0
    %1171 = vmatpush1.msra.mxu0 0.0
    %1172 = vmatprep.subr.mxu0 0.0
    %1173 = vmatpush1.msra.mxu0 0.0
    %1174 = vmatprep.subr.mxu0 0.0
    %1175 = vmatpush1.msra.mxu0 0.0
    %1176 = vmatprep.subr.mxu0 0.0
    %1177 = vmatpush1.msra.mxu0 0.0
    %1178 = vmatprep.subr.mxu0 0.0
    %1179 = vmatpush1.msra.mxu0 0.0
    %1180 = vmatprep.subr.mxu0 0.0
    %1181 = vmatpush1.msra.mxu0 0.0
    %1182 = vmatprep.subr.mxu0 0.0
    %1183 = vmatpush1.msra.mxu0 0.0
    %1184 = vmatprep.subr.mxu0 0.0
    %1185 = vmatpush1.msra.mxu0 0.0
    %1186 = vmatprep.subr.mxu0 0.0
    %1187 = vmatpush1.msra.mxu0 0.0
    %1188 = vmatprep.subr.mxu0 0.0
    %1189 = vmatpush1.msra.mxu0 0.0
    %1190 = vmatprep.subr.mxu0 0.0
    %1191 = vmatpush1.msra.mxu0 0.0
    %1192 = vmatprep.subr.mxu0 0.0
    %1193 = vmatpush1.msra.mxu0 0.0
    %1194 = vmatprep.subr.mxu0 0.0
    %1195 = vmatpush1.msra.mxu0 0.0
    %1196 = vmatprep.subr.mxu0 0.0
    %1197 = vmatpush1.msra.mxu0 0.0
    %1198 = vmatprep.subr.mxu0 0.0
    %1199 = vmatpush1.msra.mxu0 0.0
    %1200 = vmatprep.subr.mxu0 0.0
    %1201 = vmatpush1.msra.mxu0 0.0
    %1202 = vmatprep.subr.mxu0 0.0
    %1203 = vmatpush1.msra.mxu0 0.0
    %1204 = vmatprep.subr.mxu0 0.0
    %1205 = vmatpush1.msra.mxu0 0.0
    %1206 = vmatprep.subr.mxu0 0.0
    %1207 = vmatpush1.msra.mxu0 0.0
    %1208 = vmatprep.subr.mxu0 0.0
    %1209 = vmatpush1.msra.mxu0 0.0
    %1210 = vmatprep.subr.mxu0 0.0
    %1211 = vmatpush1.msra.mxu0 0.0
    %1212 = vmatprep.subr.mxu0 0.0
    %1213 = vmatpush1.msra.mxu0 0.0
    %1214 = vmatprep.mubr.f32.mxu0 0.0
    %1215 = vmatmul.mubr.f32.gmra.mrb[0].mxu0 %v1139
    %v1216 = vpop.f32.mrb[0].mxu0
    %v1217 = vadd.f32 0.0, %v1216
    %v1218 = vpop.f32.mrb[0].mxu0
    %1219 = vmatprep.mubr.f32.mxu0 0.0
    %1220 = vmatmul.mubr.f32.gmra.mrb[0].mxu0 %v1142
    %v1221 = vpop.f32.mrb[0].mxu0
    %v1222 = vadd.f32 0.0, %v1221
    %v1223 = vpop.f32.mrb[0].mxu0
    %1224 = vmatprep.mubr.f32.mxu0 0.0
    %1225 = vmatmul.mubr.f32.gmra.mrb[0].mxu0 %v1145
    %v1226 = vpop.f32.mrb[0].mxu0
    %v1227 = vadd.f32 0.0, %v1226
    %v1228 = vpop.f32.mrb[0].mxu0
    %1229 = vmatprep.mubr.f32.mxu0 0.0
    %1230 = vmatmul.mubr.f32.gmra.mrb[0].mxu0 %v1148
    %v1231 = vpop.f32.mrb[0].mxu0
    %v1232 = vadd.f32 0.0, %v1231
    %v1233 = vpop.f32.mrb[0].mxu0
    %1234 = vdwg.mxu0
    %v1235 = vmax.f32 %v1217, 0.0
    %v1236 = vmax.f32 %v1222, 0.0
    %v1237 = vmax.f32 %v1227, 0.0
    %v1238 = vmax.f32 %v1232, 0.0
    %v1239 = vld [vmem:[%s6] sm:$0xff]
    %v1240 = vld [vmem:[%s6 + $0x8] sm:$0xff]
    %v1241 = vld [vmem:[%s6 + $0x10] sm:$0xff]
    %v1242 = vld [vmem:[%s6 + $0x18] sm:$0xff]
    %v1243 = vld [vmem:[%s6 + $0x20] sm:$0xff]
    %v1244 = vld [vmem:[%s6 + $0x28] sm:$0xff]
    %v1245 = vld [vmem:[%s6 + $0x30] sm:$0xff]
    %v1246 = vld [vmem:[%s6 + $0x38] sm:$0xff]
    %v1247 = vld [vmem:[%s6 + $0x40] sm:$0xff]
    %v1248 = vld [vmem:[%s6 + $0x48] sm:$0xff]
    %v1249 = vld [vmem:[%s6 + $0x50] sm:$0xff]
    %v1250 = vld [vmem:[%s6 + $0x58] sm:$0xff]
    %v1251 = vld [vmem:[%s6 + $0x60] sm:$0xff]
    %v1252 = vld [vmem:[%s6 + $0x68] sm:$0xff]
    %v1253 = vld [vmem:[%s6 + $0x70] sm:$0xff]
    %v1254 = vld [vmem:[%s6 + $0x78] sm:$0xff]
    %1255 = vmatprep.subr.mxu0 0.0
    %1256 = vmatpush1.msra.mxu0 %v1239
    %1257 = vmatprep.subr.mxu0 0.0
    %1258 = vmatpush1.msra.mxu0 %v1240
    %1259 = vmatprep.subr.mxu0 0.0
    %1260 = vmatpush1.msra.mxu0 %v1241
    %1261 = vmatprep.subr.mxu0 0.0
    %1262 = vmatpush1.msra.mxu0 %v1242
    %1263 = vmatprep.subr.mxu0 0.0
    %1264 = vmatpush1.msra.mxu0 %v1243
    %1265 = vmatprep.subr.mxu0 0.0
    %1266 = vmatpush1.msra.mxu0 %v1244
    %1267 = vmatprep.subr.mxu0 0.0
    %1268 = vmatpush1.msra.mxu0 %v1245
    %1269 = vmatprep.subr.mxu0 0.0
    %1270 = vmatpush1.msra.mxu0 %v1246
    %1271 = vmatprep.subr.mxu0 0.0
    %1272 = vmatpush1.msra.mxu0 %v1247
    %1273 = vmatprep.subr.mxu0 0.0
    %1274 = vmatpush1.msra.mxu0 %v1248
    %1275 = vmatprep.subr.mxu0 0.0
    %1276 = vmatpush1.msra.mxu0 %v1249
    %1277 = vmatprep.subr.mxu0 0.0
    %1278 = vmatpush1.msra.mxu0 %v1250
    %1279 = vmatprep.subr.mxu0 0.0
    %1280 = vmatpush1.msra.mxu0 %v1251
    %1281 = vmatprep.subr.mxu0 0.0
    %1282 = vmatpush1.msra.mxu0 %v1252
    %1283 = vmatprep.subr.mxu0 0.0
    %1284 = vmatpush1.msra.mxu0 %v1253
    %1285 = vmatprep.subr.mxu0 0.0
    %1286 = vmatpush1.msra.mxu0 %v1254
    %1287 = vmatprep.subr.mxu0 0.0
    %1288 = vmatpush1.msra.mxu0 0.0
    %1289 = vmatprep.subr.mxu0 0.0
    %1290 = vmatpush1.msra.mxu0 0.0
    %1291 = vmatprep.subr.mxu0 0.0
    %1292 = vmatpush1.msra.mxu0 0.0
    %1293 = vmatprep.subr.mxu0 0.0
    %1294 = vmatpush1.msra.mxu0 0.0
    %1295 = vmatprep.subr.mxu0 0.0
    %1296 = vmatpush1.msra.mxu0 0.0
    %1297 = vmatprep.subr.mxu0 0.0
    %1298 = vmatpush1.msra.mxu0 0.0
    %1299 = vmatprep.subr.mxu0 0.0
    %1300 = vmatpush1.msra.mxu0 0.0
    %1301 = vmatprep.subr.mxu0 0.0
    %1302 = vmatpush1.msra.mxu0 0.0
    %1303 = vmatprep.subr.mxu0 0.0
    %1304 = vmatpush1.msra.mxu0 0.0
    %1305 = vmatprep.subr.mxu0 0.0
    %1306 = vmatpush1.msra.mxu0 0.0
    %1307 = vmatprep.subr.mxu0 0.0
    %1308 = vmatpush1.msra.mxu0 0.0
    %1309 = vmatprep.subr.mxu0 0.0
    %1310 = vmatpush1.msra.mxu0 0.0
    %1311 = vmatprep.subr.mxu0 0.0
    %1312 = vmatpush1.msra.mxu0 0.0
    %1313 = vmatprep.subr.mxu0 0.0
    %1314 = vmatpush1.msra.mxu0 0.0
    %1315 = vmatprep.subr.mxu0 0.0
    %1316 = vmatpush1.msra.mxu0 0.0
    %1317 = vmatprep.subr.mxu0 0.0
    %1318 = vmatpush1.msra.mxu0 0.0
    %1319 = vmatprep.mubr.f32.mxu0 0.0
    %1320 = vmatmul.mubr.f32.gmra.mrb[0].mxu0 %v1235
    %v1321 = vpop.f32.mrb[0].mxu0
    %v1322 = vadd.f32 0.0, %v1321
    %v1323 = vpop.f32.mrb[0].mxu0
    %1324 = vmatprep.mubr.f32.mxu0 0.0
    %1325 = vmatmul.mubr.f32.gmra.mrb[0].mxu0 %v1236
    %v1326 = vpop.f32.mrb[0].mxu0
    %v1327 = vadd.f32 0.0, %v1326
    %v1328 = vpop.f32.mrb[0].mxu0
    %1329 = vmatprep.mubr.f32.mxu0 0.0
    %1330 = vmatmul.mubr.f32.gmra.mrb[0].mxu0 %v1237
    %v1331 = vpop.f32.mrb[0].mxu0
    %v1332 = vadd.f32 0.0, %v1331
    %v1333 = vpop.f32.mrb[0].mxu0
    %1334 = vmatprep.mubr.f32.mxu0 0.0
    %1335 = vmatmul.mubr.f32.gmra.mrb[0].mxu0 %v1238
    %v1336 = vpop.f32.mrb[0].mxu0
    %v1337 = vadd.f32 0.0, %v1336
    %v1338 = vpop.f32.mrb[0].mxu0
    %1339 = vdwg.mxu0
    %v1340 = vadd.f32 %v1116, %v1322
    %v1341 = vadd.f32 %v1121, %v1327
    %v1342 = vadd.f32 %v1126, %v1332
    %v1343 = vadd.f32 %v1131, %v1337
    %1344 = vmatprep.subr.mxu0 0.0
    %1345 = vmatpush1.msra.mxu0 %v1340
    %1346 = vmatprep.subr.mxu0 0.0
    %1347 = vmatpush1.msra.mxu0 %v1341
    %1348 = vmatprep.subr.mxu0 0.0
    %1349 = vmatpush1.msra.mxu0 %v1342
    %1350 = vmatprep.subr.mxu0 0.0
    %1351 = vmatpush1.msra.mxu0 %v1343
    %1352 = vmatprep.subr.mxu0 0.0
    %1353 = vmatpush1.msra.mxu0 0.0
    %1354 = vmatprep.subr.mxu0 0.0
    %1355 = vmatpush1.msra.mxu0 0.0
    %1356 = vmatprep.subr.mxu0 0.0
    %1357 = vmatpush1.msra.mxu0 0.0
    %1358 = vmatprep.subr.mxu0 0.0
    %1359 = vmatpush1.msra.mxu0 0.0
    %1360 = vmatprep.subr.mxu0 0.0
    %1361 = vmatpush1.msra.mxu0 0.0
    %1362 = vmatprep.subr.mxu0 0.0
    %1363 = vmatpush1.msra.mxu0 0.0
    %1364 = vmatprep.subr.mxu0 0.0
    %1365 = vmatpush1.msra.mxu0 0.0
    %1366 = vmatprep.subr.mxu0 0.0
    %1367 = vmatpush1.msra.mxu0 0.0
    %1368 = vmatprep.subr.mxu0 0.0
    %1369 = vmatpush1.msra.mxu0 0.0
    %1370 = vmatprep.subr.mxu0 0.0
    %1371 = vmatpush1.msra.mxu0 0.0
    %1372 = vmatprep.subr.mxu0 0.0
    %1373 = vmatpush1.msra.mxu0 0.0
    %1374 = vmatprep.subr.mxu0 0.0
    %1375 = vmatpush1.msra.mxu0 0.0
    %1376 = vmatprep.subr.mxu0 0.0
    %1377 = vmatpush1.msra.mxu0 0.0
    %1378 = vmatprep.subr.mxu0 0.0
    %1379 = vmatpush1.msra.mxu0 0.0
    %1380 = vmatprep.subr.mxu0 0.0
    %1381 = vmatpush1.msra.mxu0 0.0
    %1382 = vmatprep.subr.mxu0 0.0
    %1383 = vmatpush1.msra.mxu0 0.0
    %1384 = vmatprep.subr.mxu0 0.0
    %1385 = vmatpush1.msra.mxu0 0.0
    %1386 = vmatprep.subr.mxu0 0.0
    %1387 = vmatpush1.msra.mxu0 0.0
    %1388 = vmatprep.subr.mxu0 0.0
    %1389 = vmatpush1.msra.mxu0 0.0
    %1390 = vmatprep.subr.mxu0 0.0
    %1391 = vmatpush1.msra.mxu0 0.0
    %1392 = vmatprep.subr.mxu0 0.0
    %1393 = vmatpush1.msra.mxu0 0.0
    %1394 = vmatprep.subr.mxu0 0.0
    %1395 = vmatpush1.msra.mxu0 0.0
    %1396 = vmatprep.subr.mxu0 0.0
    %1397 = vmatpush1.msra.mxu0 0.0
    %1398 = vmatprep.subr.mxu0 0.0
    %1399 = vmatpush1.msra.mxu0 0.0
    %1400 = vmatprep.subr.mxu0 0.0
    %1401 = vmatpush1.msra.mxu0 0.0
    %1402 = vmatprep.subr.mxu0 0.0
    %1403 = vmatpush1.msra.mxu0 0.0
    %1404 = vmatprep.subr.mxu0 0.0
    %1405 = vmatpush1.msra.mxu0 0.0
    %1406 = vmatprep.subr.mxu0 0.0
    %1407 = vmatpush1.msra.mxu0 0.0
    %1408 = vmatprep.mubr.f32.mxu0 0.0
    %1409 = vmatmul.mubr.f32.gmra.mrb[0].mxu0 %v1038
    %v1410 = vpop.f32.mrb[0].mxu0
    %v1411 = vadd.f32 0.0, %v1410
    %v1412 = vpop.f32.mrb[0].mxu0
    %1413 = vmatprep.mubr.f32.mxu0 0.0
    %1414 = vmatmul.mubr.f32.gmra.mrb[0].mxu0 %v1041
    %v1415 = vpop.f32.mrb[0].mxu0
    %v1416 = vadd.f32 0.0, %v1415
    %v1417 = vpop.f32.mrb[0].mxu0
    %1418 = vmatprep.mubr.f32.mxu0 0.0
    %1419 = vmatmul.mubr.f32.gmra.mrb[0].mxu0 %v1044
    %v1420 = vpop.f32.mrb[0].mxu0
    %v1421 = vadd.f32 0.0, %v1420
    %v1422 = vpop.f32.mrb[0].mxu0
    %1423 = vmatprep.mubr.f32.mxu0 0.0
    %1424 = vmatmul.mubr.f32.gmra.mrb[0].mxu0 %v1047
    %v1425 = vpop.f32.mrb[0].mxu0
    %v1426 = vadd.f32 0.0, %v1425
    %v1427 = vpop.f32.mrb[0].mxu0
    %1428 = vdwg.mxu0
    %1429 = vst.msk [vmem:[#allocation13] sm:$0xff] %vm131, %v1411
    %1430 = vst.msk [vmem:[#allocation13 + $0x8] sm:$0xff] %vm131, %v1416
    %1431 = vst.msk [vmem:[#allocation13 + $0x10] sm:$0xff] %vm131, %v1421
    %1432 = vst.msk [vmem:[#allocation13 + $0x18] sm:$0xff] %vm131, %v1426
    // Predicated region
    $region70: #{forward.1} parent=1 // pred_check
      _
    $region71: #{forward.1} parent=1 // pred_check_branch
      %1434 = sbr.rel (0) target = $region73
    $region72: #{forward.1} parent=1 // pred_region
      %s1436 = ssub.s32 512, 512
      %1437 = vsyncadd [#allocation4], %s1436
      %s1438 = sshll.u32 [#allocation13], 4
      %s1439 = int_to_ptr.vmem [resolvable:$true] %s1438
      %1444 = dma.vmem_to_hbm [thread:$0]  %s1439, 512, %s11, [#allocation4], 128, 128, 8
    $region73: #{forward.1} parent=1 // pred_fallthru
      _
    // Predicated region
    $region74: #{forward.1} parent=1 // pred_check
      _
    $region75: #{forward.1} parent=1 // pred_check_branch
      %1446 = sbr.rel (0) target = $region77
    $region76: #{forward.1} parent=1 // pred_region
      _
    $region77: #{forward.1} parent=1 // pred_fallthru
      _
    // Predicated region
    $region78: #{forward.1} parent=1 // pred_check
      _
    $region79: #{forward.1} parent=1 // pred_check_branch
      %1448 = sbr.rel (0) target = $region81
    $region80: #{forward.1} parent=1 // pred_region
      %1449 = dma.done [#allocation4], 512
    $region81: #{forward.1} parent=1 // pred_fallthru
      _
    // Predicated region
    $region82: #{forward.1} parent=1 // pred_check
      _
    $region83: #{forward.1} parent=1 // pred_check_branch
      %1451 = sbr.rel (0) target = $region85
    $region84: #{forward.1} parent=1 // pred_region
      _
    $region85: #{forward.1} parent=1 // pred_fallthru
      _
    %1452 = vsyncpa [#allocation3], 1
    %1453 = vsyncpa [#allocation6], 1
    %1454 = vsyncpa [#allocation9], 1
    %1455 = vsyncpa [#allocation12], 1
    %1456 = vsyncpa [#allocation4], 1

</llo_original>
